<compile_context>
chip_gen: v7x
topology: tpu7x:2x2x1
jax: 0.10.0
libtpu: 0.0.40
codegen_flags: <defaults>
</compile_context>

<pallas_src>
import math
import functools

import jax
import jax.numpy as jnp
from jax.experimental import pallas as pl
from jax.experimental.pallas import tpu as pltpu

# ---- small, deterministic hyper-parameters consistent with the module ----
B = 2             # batch
S = 8             # max_length / sequence length
HS = 16           # hidden_size
IC = 2 * HS       # in_channels  = hidden_size * 2 = 32
OC = HS           # out_channels = hidden_size      = 16
HH = 32           # hidden_hidden_size (Bert hidden)
NH = 2            # num_attention_heads
HD = HH // NH     # head dim = 16
IM = 64           # intermediate_size
MC = 16           # model_channels (time_channels)
TED = 2 * MC      # time_embed_dim = 32
NL = 2            # num_hidden_layers
BS = B * S        # flattened token count = 16
OUTW = 128        # lane-dense padded output width
LN_EPS = 1e-12    # BertConfig.layer_norm_eps
INIT_STD = 0.02   # BertConfig.initializer_range
NEG_INF = -1e9    # additive mask for cross-batch attention entries

# ---- gb slab row map (f32, shape (GB_ROWS, 128)) ----
R_POS   = 0                 # rows 0..15 : position embedding tiled to (BS, HH)
R_UPB1  = R_POS + BS        # 16
R_UPB2  = R_UPB1 + 1        # 17
R_TEB1  = R_UPB2 + 1        # 18
R_TEB2  = R_TEB1 + 1        # 19
R_LNW   = R_TEB2 + 1        # 20
R_LNB   = R_LNW + 1         # 21
R_DNB1  = R_LNB + 1         # 22
R_DNB2  = R_DNB1 + 1        # 23  (padded to OUTW lanes)
R_MASK  = R_DNB2 + 1        # 24..39 : block-diagonal additive attention mask (BS, BS)
R_EMAT  = R_MASK + BS       # 40..55 : batch->token broadcast matrix (BS, B)
GB_ROWS = R_EMAT + BS       # 56

# ---- ew slab row map (bf16, shape (EW_ROWS, HH), row-stacked weights) ----
E_UPW1  = 0                 # (IC, HH)
E_UPW2  = E_UPW1 + IC       # 32   (HH, HH)
E_TEW1  = E_UPW2 + HH       # 64   (MC, TED)
E_TEW2  = E_TEW1 + MC       # 80   (TED, HH)
E_DNW1  = E_TEW2 + TED      # 112  (HH, HH)
EW_ROWS = E_DNW1 + HH       # 144

# ---- per-layer weight slab lane map (bf16, shape (NL, HH, LWA_COLS)) ----
A_QKV = 0                   # lanes 0..95   : wq|wk|wv
A_WO  = 3 * HH              # lanes 96..127 : wo
A_WI  = 4 * HH              # lanes 128..191: wi
LWA_COLS = 4 * HH + IM      # 192

# ---- per-layer bias slab row map (f32, shape (NL, 8, 128)) ----
L_BQKV, L_BO, L_LN1W, L_LN1B, L_BI, L_BO2, L_LN2W, L_LN2B = range(8)


# ---------------------------------------------------------------------------
# trace-time helpers
# ---------------------------------------------------------------------------
def _layernorm(x, w, b):
    mu = jnp.mean(x, axis=-1, keepdims=True)
    var = jnp.mean(jnp.square(x - mu), axis=-1, keepdims=True)
    return (x - mu) * jax.lax.rsqrt(var + LN_EPS) * w + b


def _gelu_tanh(x):
    # tanh GELU (EUP path).  TODO(synk): HF Bert default is exact erf-GELU; the
    # tanh form differs by ~1e-3 which is inside the tolerance used here.
    return 0.5 * x * (1.0 + jnp.tanh(0.7978845608028654 * (x + 0.044715 * x * x * x)))


# ---------------------------------------------------------------------------
# The single fused kernel (everything VMEM/vreg resident, 8 inputs, 1 output)
# ---------------------------------------------------------------------------
def _fused_kernel(x_ref, ts_ref, ew_ref, dw2_ref, gb_ref, lwa_ref, lwb_ref, lb_ref,
                  out_ref):
    f32, bf16 = jnp.float32, jnp.bfloat16

    # hoisted constants / broadcast slabs (loaded once)
    amask  = gb_ref[R_MASK:R_MASK + BS, :BS]         # (BS, BS) additive batch mask
    emat   = gb_ref[R_EMAT:R_EMAT + BS, :B]          # (BS, B)  batch->token broadcast
    pos_bs = gb_ref[R_POS:R_POS + BS, :HH]           # (BS, HH) position emb (pre-tiled)

    # ---- time_embed: Linear -> SiLU -> Linear  (sinusoid computed host-side) ----
    tsin = ts_ref[...]                                                    # (B, MC) f32
    th = jnp.dot(tsin.astype(bf16), ew_ref[E_TEW1:E_TEW1 + MC, :],
                 preferred_element_type=f32) + gb_ref[R_TEB1:R_TEB1 + 1, :TED]
    th = th * jax.nn.sigmoid(th)
    temb = jnp.dot(th.astype(bf16), ew_ref[E_TEW2:E_TEW2 + TED, :],
                   preferred_element_type=f32) + gb_ref[R_TEB2:R_TEB2 + 1, :HH]  # (B, HH)
    # broadcast temb over the sequence with a tiny (BS,B)x(B,HH) matmul -> no reshapes
    temb_bs = jnp.dot(emat.astype(bf16), temb.astype(bf16),
                      preferred_element_type=f32)                         # (BS, HH)

    # ---- input_up_proj on flattened tokens (BS, IC) ----
    x_b = x_ref[...].astype(bf16)
    h = jnp.tanh(jnp.dot(x_b, ew_ref[E_UPW1:E_UPW1 + IC, :],
                         preferred_element_type=f32) + gb_ref[R_UPB1:R_UPB1 + 1, :HH])
    h = jnp.dot(h.astype(bf16), ew_ref[E_UPW2:E_UPW2 + HH, :],
                preferred_element_type=f32) + gb_ref[R_UPB2:R_UPB2 + 1, :HH]

    # ---- pos emb + temb + LayerNorm (dropout = identity in eval) ----
    h = _layernorm(h + pos_bs + temb_bs,
                   gb_ref[R_LNW:R_LNW + 1, :HH], gb_ref[R_LNB:R_LNB + 1, :HH])

    # ---- BertEncoder: NL post-LN layers, activations never leave VMEM ----
    scale = 1.0 / math.sqrt(HD)
    for l in range(NL):                               # NL=2: short static unroll
        wa = lwa_ref[l]                               # (HH, 192) bf16: wqkv|wo|wi
        bl = lb_ref[l]                                # (8, 128)  f32 biases + LN params

        # fused QKV projection: ONE (BS,HH)x(HH,3HH) matmul
        qkv = jnp.dot(h.astype(bf16), wa[:, A_QKV:A_QKV + 3 * HH],
                      preferred_element_type=f32) + bl[L_BQKV:L_BQKV + 1, :3 * HH]
        qkv_b = qkv.astype(bf16)

        # flattened (BS x BS) attention per head + block-diagonal batch mask
        ctxs = []
        for hd in range(NH):
            qo, ko, vo = hd * HD, HH + hd * HD, 2 * HH + hd * HD
            q_h = qkv_b[:, qo:qo + HD]
            k_h = qkv_b[:, ko:ko + HD]
            v_h = qkv_b[:, vo:vo + HD]
            # q @ k^T (contraction on last dims, no explicit transpose materialized)
            sc = jax.lax.dot_general(q_h, k_h, (((1,), (1,)), ((), ())),
                                     preferred_element_type=f32) * scale + amask
            sc = sc - jnp.max(sc, axis=-1, keepdims=True)
            p = jnp.exp(sc)
            p = p / jnp.sum(p, axis=-1, keepdims=True)
            ctxs.append(jnp.dot(p.astype(bf16), v_h, preferred_element_type=f32))
        ctx = jnp.concatenate(ctxs, axis=-1)          # (BS, HH)

        # single attention output projection
        attn = jnp.dot(ctx.astype(bf16), wa[:, A_WO:A_WO + HH],
                       preferred_element_type=f32) + bl[L_BO:L_BO + 1, :HH]
        h1 = _layernorm(attn + h,
                        bl[L_LN1W:L_LN1W + 1, :HH], bl[L_LN1B:L_LN1B + 1, :HH])

        # FFN: GELU(h1 Wi + bi) Wo2 + bo2
        ffn = _gelu_tanh(jnp.dot(h1.astype(bf16), wa[:, A_WI:A_WI + IM],
                                 preferred_element_type=f32) + bl[L_BI:L_BI + 1, :IM])
        ffn = jnp.dot(ffn.astype(bf16), lwb_ref[l],
                      preferred_element_type=f32) + bl[L_BO2:L_BO2 + 1, :HH]
        h = _layernorm(ffn + h1,
                       bl[L_LN2W:L_LN2W + 1, :HH], bl[L_LN2B:L_LN2B + 1, :HH])

    # ---- output_down_proj: Linear -> Tanh -> Linear, lane-dense (BS,128) store ----
    y = jnp.tanh(jnp.dot(h.astype(bf16), ew_ref[E_DNW1:E_DNW1 + HH, :],
                         preferred_element_type=f32) + gb_ref[R_DNB1:R_DNB1 + 1, :HH])
    out_ref[...] = jnp.dot(y.astype(bf16), dw2_ref[...],
                           preferred_element_type=f32) + gb_ref[R_DNB2:R_DNB2 + 1, :]


# ---------------------------------------------------------------------------
# Wrapper: pack params into a handful of slabs (trace-time constants), 1 pallas_call
# ---------------------------------------------------------------------------
def _pack_params(params):
    f32, bf16 = jnp.float32, jnp.bfloat16
    L = params["layers"]

    def row(v, width=128):
        v = jnp.asarray(v, f32).reshape(1, -1)
        return jnp.pad(v, ((0, 0), (0, width - v.shape[1])))

    # global constant slab (f32): pos-emb tiled to tokens, all global biases/LN params,
    # block-diagonal attention mask and the batch->token broadcast matrix.
    pos_bs = jnp.tile(jnp.asarray(params["pos_emb"], f32), (B, 1))          # (BS, HH)
    tok_batch = jnp.arange(BS, dtype=jnp.int32) // S
    amask = jnp.where(tok_batch[:, None] == tok_batch[None, :], 0.0, NEG_INF).astype(f32)
    emat = jax.nn.one_hot(tok_batch, B, dtype=f32)                          # (BS, B)
    gb = jnp.concatenate([
        jnp.pad(pos_bs, ((0, 0), (0, 128 - HH))),
        row(params["up_b1"]), row(params["up_b2"]),
        row(params["te_b1"]), row(params["te_b2"]),
        row(params["ln_w"]), row(params["ln_b"]),
        row(params["dn_b1"]), row(params["dn_b2"]),
        jnp.pad(amask, ((0, 0), (0, 128 - BS))),
        jnp.pad(emat, ((0, 0), (0, 128 - B))),
    ], axis=0)
    assert gb.shape == (GB_ROWS, 128)

    # embedding / projection weights, row-stacked (bf16, common 32-lane width)
    ew = jnp.concatenate([
        params["up_w1"], params["up_w2"], params["te_w1"],
        params["te_w2"], params["dn_w1"],
    ], axis=0).astype(bf16)
    assert ew.shape == (EW_ROWS, HH)

    # final projection padded to 128 lanes -> lane-dense output store
    dw2 = jnp.pad(jnp.asarray(params["dn_w2"], f32),
                  ((0, 0), (0, OUTW - OC))).astype(bf16)                    # (HH, 128)

    # per-layer weight slabs (bf16)
    lwa = jnp.stack([
        jnp.concatenate([l["wq"], l["wk"], l["wv"], l["wo"], l["wi"]], axis=1)
        for l in L], axis=0).astype(bf16)                                   # (NL, HH, 192)
    assert lwa.shape == (NL, HH, LWA_COLS)
    lwb = jnp.stack([l["wo2"] for l in L], axis=0).astype(bf16)             # (NL, IM, HH)

    # per-layer biases + LN params (f32), one padded sublane row each
    def lrows(l):
        return jnp.concatenate([
            row(jnp.concatenate([jnp.asarray(l["bq"], f32).reshape(1, -1),
                                 jnp.asarray(l["bk"], f32).reshape(1, -1),
                                 jnp.asarray(l["bv"], f32).reshape(1, -1)], axis=1)),
            row(l["bo"]), row(l["ln1_w"]), row(l["ln1_b"]),
            row(l["bi"]), row(l["bo2"]), row(l["ln2_w"]), row(l["ln2_b"]),
        ], axis=0)
    lb = jnp.stack([lrows(l) for l in L], axis=0)                           # (NL, 8, 128)

    return ew, dw2, gb, lwa, lwb, lb


def rings_net_forward(params, x_t, t):
    # TODO(synk): on v7x, chip-gate a grid=(B,) / dimension_semantics=("parallel",)
    # batch split across the two TensorCores; it is a no-op (pure overhead) on v5e/v6e.
    ew, dw2, gb, lwa, lwb, lb = _pack_params(params)

    # host/XLA-side sinusoidal timestep embedding (tiny (B, MC) op on `t`).
    # TODO(synk): fold cos/sin back in-kernel once Mosaic sin/cos lowering is confirmed.
    half = MC // 2
    freqs = jnp.exp(-math.log(10000.0) * jnp.arange(half, dtype=jnp.float32) / half)
    a = t.astype(jnp.float32).reshape(B, 1) * freqs[None, :]
    tsin = jnp.concatenate([jnp.cos(a), jnp.sin(a)], axis=-1)               # (B, MC)

    args = (x_t.reshape(BS, IC).astype(jnp.float32), tsin, ew, dw2, gb, lwa, lwb, lb)
    vmem = pl.BlockSpec(memory_space=pltpu.MemorySpace.VMEM)
    out = pl.pallas_call(
        _fused_kernel,
        out_shape=jax.ShapeDtypeStruct((BS, OUTW), jnp.float32),
        in_specs=[vmem] * len(args),
        out_specs=vmem,
        cost_estimate=pl.CostEstimate(flops=850_000, transcendentals=6_000,
                                      bytes_accessed=100_000),
    )(*args)
    return out[:, :OC].reshape(B, S, OC)


# ---------------------------------------------------------------------------
# Pure-JAX f32 reference (same math, no Pallas) for the correctness check
# ---------------------------------------------------------------------------
def _reference_forward(params, x_t, t):
    def ln(x, w, b):
        mu = jnp.mean(x, axis=-1, keepdims=True)
        var = jnp.mean(jnp.square(x - mu), axis=-1, keepdims=True)
        return (x - mu) * jax.lax.rsqrt(var + LN_EPS) * w + b

    half = MC // 2
    freqs = jnp.exp(-math.log(10000.0) * jnp.arange(half, dtype=jnp.float32) / half)
    a = t.astype(jnp.float32)[:, None] * freqs[None, :]
    tsin = jnp.concatenate([jnp.cos(a), jnp.sin(a)], axis=-1)               # (B, MC)

    th = tsin @ params["te_w1"] + params["te_b1"]
    th = th * jax.nn.sigmoid(th)
    temb = th @ params["te_w2"] + params["te_b2"]                           # (B, HH)

    h = jnp.tanh(x_t @ params["up_w1"] + params["up_b1"])
    h = h @ params["up_w2"] + params["up_b2"]                               # (B, S, HH)
    e = h + params["pos_emb"][None] + temb[:, None, :]
    h = ln(e, params["ln_w"], params["ln_b"])

    for l in params["layers"]:
        q = h @ l["wq"] + l["bq"]
        k = h @ l["wk"] + l["bk"]
        v = h @ l["wv"] + l["bv"]
        qh = q.reshape(B, S, NH, HD).transpose(0, 2, 1, 3)
        kh = k.reshape(B, S, NH, HD).transpose(0, 2, 1, 3)
        vh = v.reshape(B, S, NH, HD).transpose(0, 2, 1, 3)
        sc = jnp.einsum("bhqd,bhkd->bhqk", qh, kh) / math.sqrt(HD)
        p = jax.nn.softmax(sc, axis=-1)
        ctx = jnp.einsum("bhqk,bhkd->bhqd", p, vh).transpose(0, 2, 1, 3).reshape(B, S, HH)
        attn = ctx @ l["wo"] + l["bo"]
        h1 = ln(attn + h, l["ln1_w"], l["ln1_b"])
        f = _gelu_tanh(h1 @ l["wi"] + l["bi"]) @ l["wo2"] + l["bo2"]
        h = ln(f + h1, l["ln2_w"], l["ln2_b"])

    y = jnp.tanh(h @ params["dn_w1"] + params["dn_b1"])
    return y @ params["dn_w2"] + params["dn_b2"]


# ---------------------------------------------------------------------------
# deterministic parameter init (mirrors _initialize_weights: N(0, 0.02) weights,
# zero biases, LayerNorm weight=1 / bias=0); weights stored (in, out)
# ---------------------------------------------------------------------------
def init_params(key):
    keys = iter(jax.random.split(key, 64))

    def normal(shape):
        return INIT_STD * jax.random.normal(next(keys), shape, jnp.float32)

    p = {
        "up_w1": normal((IC, HH)), "up_b1": jnp.zeros((1, HH), jnp.float32),
        "up_w2": normal((HH, HH)), "up_b2": jnp.zeros((1, HH), jnp.float32),
        "te_w1": normal((MC, TED)), "te_b1": jnp.zeros((1, TED), jnp.float32),
        "te_w2": normal((TED, HH)), "te_b2": jnp.zeros((1, HH), jnp.float32),
        "pos_emb": normal((S, HH)),
        "ln_w": jnp.ones((1, HH), jnp.float32), "ln_b": jnp.zeros((1, HH), jnp.float32),
        "dn_w1": normal((HH, HH)), "dn_b1": jnp.zeros((1, HH), jnp.float32),
        "dn_w2": normal((HH, OC)), "dn_b2": jnp.zeros((1, OC), jnp.float32),
        "layers": [],
    }
    for _ in range(NL):
        p["layers"].append({
            "wq": normal((HH, HH)), "bq": jnp.zeros((1, HH), jnp.float32),
            "wk": normal((HH, HH)), "bk": jnp.zeros((1, HH), jnp.float32),
            "wv": normal((HH, HH)), "bv": jnp.zeros((1, HH), jnp.float32),
            "wo": normal((HH, HH)), "bo": jnp.zeros((1, HH), jnp.float32),
            "ln1_w": jnp.ones((1, HH), jnp.float32), "ln1_b": jnp.zeros((1, HH), jnp.float32),
            "wi": normal((HH, IM)), "bi": jnp.zeros((1, IM), jnp.float32),
            "wo2": normal((IM, HH)), "bo2": jnp.zeros((1, HH), jnp.float32),
            "ln2_w": jnp.ones((1, HH), jnp.float32), "ln2_b": jnp.zeros((1, HH), jnp.float32),
        })
    return p


if __name__ == "__main__":
    key = jax.random.PRNGKey(0)
    pkey, xkey, tkey = jax.random.split(key, 3)

    params = init_params(pkey)
    x_t = jax.random.normal(xkey, (B, S, IC), jnp.float32)              # (2, 8, 32)
    t = jax.random.randint(tkey, (B,), 0, 1000).astype(jnp.float32)     # (2,)

    fwd = jax.jit(functools.partial(rings_net_forward, params))
    out = fwd(x_t, t)
    jax.block_until_ready(out)

    assert out.shape == (B, S, OC), out.shape
    assert out.dtype == jnp.float32
    assert bool(jnp.all(jnp.isfinite(out)))

    ref = _reference_forward(params, x_t, t)
    max_err = float(jnp.max(jnp.abs(out - ref)))
    assert bool(jnp.allclose(out, ref, atol=3e-3, rtol=2e-2)), max_err

    print("KERNEL_OK")
</pallas_src>

<mosaic_0001>
module attributes {stable_mosaic.version = 11 : i64} {
  func.func @_fused_kernel(%arg0: memref<16x32xf32, #tpu.memory_space<vmem>>, %arg1: memref<2x16xf32, #tpu.memory_space<vmem>>, %arg2: memref<144x32xbf16, #tpu.memory_space<vmem>>, %arg3: memref<32x128xbf16, #tpu.memory_space<vmem>>, %arg4: memref<56x128xf32, #tpu.memory_space<vmem>>, %arg5: memref<2x32x192xbf16, #tpu.memory_space<vmem>>, %arg6: memref<2x64x32xbf16, #tpu.memory_space<vmem>>, %arg7: memref<2x8x128xf32, #tpu.memory_space<vmem>>, %arg8: memref<16x128xf32, #tpu.memory_space<vmem>>) attributes {dimension_semantics = [], scalar_prefetch = 0 : i64, scratch_operands = 0 : i64, tpu.core_type = #tpu.core_type<tc>} {
    %c24 = arith.constant 24 : index
    %c0 = arith.constant 0 : index
    %0 = vector.load %arg4[%c24, %c0] : memref<56x128xf32, #tpu.memory_space<vmem>>, vector<16x16xf32>
    %c40 = arith.constant 40 : index
    %c0_0 = arith.constant 0 : index
    %1 = vector.load %arg4[%c40, %c0_0] : memref<56x128xf32, #tpu.memory_space<vmem>>, vector<16x2xf32>
    %c0_1 = arith.constant 0 : index
    %c0_2 = arith.constant 0 : index
    %2 = vector.load %arg4[%c0_1, %c0_2] : memref<56x128xf32, #tpu.memory_space<vmem>>, vector<16x32xf32>
    %c0_3 = arith.constant 0 : index
    %c0_4 = arith.constant 0 : index
    %3 = vector.load %arg1[%c0_3, %c0_4] : memref<2x16xf32, #tpu.memory_space<vmem>>, vector<2x16xf32>
    %4 = arith.truncf %3 : vector<2x16xf32> to vector<2x16xbf16>
    %c64 = arith.constant 64 : index
    %c0_5 = arith.constant 0 : index
    %5 = vector.load %arg2[%c64, %c0_5] : memref<144x32xbf16, #tpu.memory_space<vmem>>, vector<16x32xbf16>
    %cst = arith.constant dense<0.000000e+00> : vector<2x32xf32>
    %6 = tpu.matmul %4, %5, %cst {dimension_numbers = #tpu.dot_dimension_numbers<[1], [0], [0], [1], [0, 0, 1, 1], [], []>} : vector<2x16xbf16>, vector<16x32xbf16>, vector<2x32xf32> -> vector<2x32xf32>
    %c18 = arith.constant 18 : index
    %c0_6 = arith.constant 0 : index
    %7 = vector.load %arg4[%c18, %c0_6] : memref<56x128xf32, #tpu.memory_space<vmem>>, vector<1x32xf32>
    %8 = vector.broadcast %7 : vector<1x32xf32> to vector<2x32xf32>
    %9 = arith.addf %6, %8 : vector<2x32xf32>
    %10 = arith.negf %9 : vector<2x32xf32>
    %11 = math.exp %10 : vector<2x32xf32>
    %cst_7 = arith.constant 1.000000e+00 : f32
    %12 = vector.broadcast %cst_7 : f32 to vector<2x32xf32>
    %13 = arith.addf %12, %11 : vector<2x32xf32>
    %14 = arith.divf %12, %13 : vector<2x32xf32>
    %15 = arith.mulf %9, %14 : vector<2x32xf32>
    %16 = arith.truncf %15 : vector<2x32xf32> to vector<2x32xbf16>
    %c80 = arith.constant 80 : index
    %c0_8 = arith.constant 0 : index
    %17 = vector.load %arg2[%c80, %c0_8] : memref<144x32xbf16, #tpu.memory_space<vmem>>, vector<32x32xbf16>
    %cst_9 = arith.constant dense<0.000000e+00> : vector<2x32xf32>
    %18 = tpu.matmul %16, %17, %cst_9 {dimension_numbers = #tpu.dot_dimension_numbers<[1], [0], [0], [1], [0, 0, 1, 1], [], []>} : vector<2x32xbf16>, vector<32x32xbf16>, vector<2x32xf32> -> vector<2x32xf32>
    %c19 = arith.constant 19 : index
    %c0_10 = arith.constant 0 : index
    %19 = vector.load %arg4[%c19, %c0_10] : memref<56x128xf32, #tpu.memory_space<vmem>>, vector<1x32xf32>
    %20 = vector.broadcast %19 : vector<1x32xf32> to vector<2x32xf32>
    %21 = arith.addf %18, %20 : vector<2x32xf32>
    %22 = arith.truncf %1 : vector<16x2xf32> to vector<16x2xbf16>
    %23 = arith.truncf %21 : vector<2x32xf32> to vector<2x32xbf16>
    %cst_11 = arith.constant dense<0.000000e+00> : vector<16x32xf32>
    %24 = tpu.matmul %22, %23, %cst_11 {dimension_numbers = #tpu.dot_dimension_numbers<[1], [0], [0], [1], [0, 0, 1, 1], [], []>} : vector<16x2xbf16>, vector<2x32xbf16>, vector<16x32xf32> -> vector<16x32xf32>
    %c0_12 = arith.constant 0 : index
    %c0_13 = arith.constant 0 : index
    %25 = vector.load %arg0[%c0_12, %c0_13] : memref<16x32xf32, #tpu.memory_space<vmem>>, vector<16x32xf32>
    %26 = arith.truncf %25 : vector<16x32xf32> to vector<16x32xbf16>
    %c0_14 = arith.constant 0 : index
    %c0_15 = arith.constant 0 : index
    %27 = vector.load %arg2[%c0_14, %c0_15] : memref<144x32xbf16, #tpu.memory_space<vmem>>, vector<32x32xbf16>
    %cst_16 = arith.constant dense<0.000000e+00> : vector<16x32xf32>
    %28 = tpu.matmul %26, %27, %cst_16 {dimension_numbers = #tpu.dot_dimension_numbers<[1], [0], [0], [1], [0, 0, 1, 1], [], []>} : vector<16x32xbf16>, vector<32x32xbf16>, vector<16x32xf32> -> vector<16x32xf32>
    %c16 = arith.constant 16 : index
    %c0_17 = arith.constant 0 : index
    %29 = vector.load %arg4[%c16, %c0_17] : memref<56x128xf32, #tpu.memory_space<vmem>>, vector<1x32xf32>
    %30 = vector.broadcast %29 : vector<1x32xf32> to vector<16x32xf32>
    %31 = arith.addf %28, %30 : vector<16x32xf32>
    %32 = math.tanh %31 : vector<16x32xf32>
    %33 = arith.truncf %32 : vector<16x32xf32> to vector<16x32xbf16>
    %c32 = arith.constant 32 : index
    %c0_18 = arith.constant 0 : index
    %34 = vector.load %arg2[%c32, %c0_18] : memref<144x32xbf16, #tpu.memory_space<vmem>>, vector<32x32xbf16>
    %cst_19 = arith.constant dense<0.000000e+00> : vector<16x32xf32>
    %35 = tpu.matmul %33, %34, %cst_19 {dimension_numbers = #tpu.dot_dimension_numbers<[1], [0], [0], [1], [0, 0, 1, 1], [], []>} : vector<16x32xbf16>, vector<32x32xbf16>, vector<16x32xf32> -> vector<16x32xf32>
    %c17 = arith.constant 17 : index
    %c0_20 = arith.constant 0 : index
    %36 = vector.load %arg4[%c17, %c0_20] : memref<56x128xf32, #tpu.memory_space<vmem>>, vector<1x32xf32>
    %37 = vector.broadcast %36 : vector<1x32xf32> to vector<16x32xf32>
    %38 = arith.addf %35, %37 : vector<16x32xf32>
    %39 = arith.addf %38, %2 : vector<16x32xf32>
    %40 = arith.addf %39, %24 : vector<16x32xf32>
    %c20 = arith.constant 20 : index
    %c0_21 = arith.constant 0 : index
    %41 = vector.load %arg4[%c20, %c0_21] : memref<56x128xf32, #tpu.memory_space<vmem>>, vector<1x32xf32>
    %c21 = arith.constant 21 : index
    %c0_22 = arith.constant 0 : index
    %42 = vector.load %arg4[%c21, %c0_22] : memref<56x128xf32, #tpu.memory_space<vmem>>, vector<1x32xf32>
    %cst_23 = arith.constant dense<0.000000e+00> : vector<16xf32>
    %43 = vector.multi_reduction <add>, %40, %cst_23 [1] : vector<16x32xf32> to vector<16xf32>
    %44 = vector.shape_cast %43 : vector<16xf32> to vector<16x1xf32>
    %cst_24 = arith.constant 3.200000e+01 : f32
    %45 = vector.broadcast %cst_24 : f32 to vector<16x1xf32>
    %46 = arith.divf %44, %45 : vector<16x1xf32>
    %47 = vector.broadcast %46 : vector<16x1xf32> to vector<16x32xf32>
    %48 = arith.subf %40, %47 : vector<16x32xf32>
    %49 = arith.mulf %48, %48 : vector<16x32xf32>
    %cst_25 = arith.constant dense<0.000000e+00> : vector<16xf32>
    %50 = vector.multi_reduction <add>, %49, %cst_25 [1] : vector<16x32xf32> to vector<16xf32>
    %51 = vector.shape_cast %50 : vector<16xf32> to vector<16x1xf32>
    %cst_26 = arith.constant 3.200000e+01 : f32
    %52 = vector.broadcast %cst_26 : f32 to vector<16x1xf32>
    %53 = arith.divf %51, %52 : vector<16x1xf32>
    %54 = vector.broadcast %46 : vector<16x1xf32> to vector<16x32xf32>
    %55 = arith.subf %40, %54 : vector<16x32xf32>
    %cst_27 = arith.constant 9.99999996E-13 : f32
    %56 = vector.broadcast %cst_27 : f32 to vector<16x1xf32>
    %57 = arith.addf %53, %56 : vector<16x1xf32>
    %58 = math.rsqrt %57 : vector<16x1xf32>
    %59 = vector.broadcast %58 : vector<16x1xf32> to vector<16x32xf32>
    %60 = arith.mulf %55, %59 : vector<16x32xf32>
    %61 = vector.broadcast %41 : vector<1x32xf32> to vector<16x32xf32>
    %62 = arith.mulf %60, %61 : vector<16x32xf32>
    %63 = vector.broadcast %42 : vector<1x32xf32> to vector<16x32xf32>
    %64 = arith.addf %62, %63 : vector<16x32xf32>
    %c0_28 = arith.constant 0 : index
    %c0_29 = arith.constant 0 : index
    %c0_30 = arith.constant 0 : index
    %65 = vector.load %arg5[%c0_28, %c0_29, %c0_30] : memref<2x32x192xbf16, #tpu.memory_space<vmem>>, vector<1x32x192xbf16>
    %66 = vector.shape_cast %65 : vector<1x32x192xbf16> to vector<32x192xbf16>
    %c0_31 = arith.constant 0 : index
    %c0_32 = arith.constant 0 : index
    %c0_33 = arith.constant 0 : index
    %67 = vector.load %arg7[%c0_31, %c0_32, %c0_33] : memref<2x8x128xf32, #tpu.memory_space<vmem>>, vector<1x8x128xf32>
    %68 = vector.shape_cast %67 : vector<1x8x128xf32> to vector<8x128xf32>
    %69 = arith.truncf %64 : vector<16x32xf32> to vector<16x32xbf16>
    %70 = vector.extract_strided_slice %66 {offsets = [0, 0], sizes = [32, 96], strides = [1, 1]} : vector<32x192xbf16> to vector<32x96xbf16>
    %cst_34 = arith.constant dense<0.000000e+00> : vector<16x96xf32>
    %71 = tpu.matmul %69, %70, %cst_34 {dimension_numbers = #tpu.dot_dimension_numbers<[1], [0], [0], [1], [0, 0, 1, 1], [], []>} : vector<16x32xbf16>, vector<32x96xbf16>, vector<16x96xf32> -> vector<16x96xf32>
    %72 = vector.extract_strided_slice %68 {offsets = [0, 0], sizes = [1, 96], strides = [1, 1]} : vector<8x128xf32> to vector<1x96xf32>
    %73 = vector.broadcast %72 : vector<1x96xf32> to vector<16x96xf32>
    %74 = arith.addf %71, %73 : vector<16x96xf32>
    %75 = arith.truncf %74 : vector<16x96xf32> to vector<16x96xbf16>
    %76 = vector.extract_strided_slice %75 {offsets = [0, 0], sizes = [16, 16], strides = [1, 1]} : vector<16x96xbf16> to vector<16x16xbf16>
    %77 = vector.extract_strided_slice %75 {offsets = [0, 32], sizes = [16, 16], strides = [1, 1]} : vector<16x96xbf16> to vector<16x16xbf16>
    %78 = vector.extract_strided_slice %75 {offsets = [0, 64], sizes = [16, 16], strides = [1, 1]} : vector<16x96xbf16> to vector<16x16xbf16>
    %cst_35 = arith.constant dense<0.000000e+00> : vector<16x16xf32>
    %79 = tpu.matmul %76, %77, %cst_35 {dimension_numbers = #tpu.dot_dimension_numbers<[1], [1], [0], [0], [0, 0, 1, 0], [], []>} : vector<16x16xbf16>, vector<16x16xbf16>, vector<16x16xf32> -> vector<16x16xf32>
    %cst_36 = arith.constant 2.500000e-01 : f32
    %80 = vector.broadcast %cst_36 : f32 to vector<16x16xf32>
    %81 = arith.mulf %79, %80 : vector<16x16xf32>
    %82 = arith.addf %81, %0 : vector<16x16xf32>
    %cst_37 = arith.constant dense<0xFF800000> : vector<16xf32>
    %83 = vector.multi_reduction <maximumf>, %82, %cst_37 [1] : vector<16x16xf32> to vector<16xf32>
    %84 = vector.shape_cast %83 : vector<16xf32> to vector<16x1xf32>
    %85 = vector.broadcast %84 : vector<16x1xf32> to vector<16x16xf32>
    %86 = arith.subf %82, %85 : vector<16x16xf32>
    %87 = math.exp %86 : vector<16x16xf32>
    %cst_38 = arith.constant dense<0.000000e+00> : vector<16xf32>
    %88 = vector.multi_reduction <add>, %87, %cst_38 [1] : vector<16x16xf32> to vector<16xf32>
    %89 = vector.shape_cast %88 : vector<16xf32> to vector<16x1xf32>
    %90 = vector.broadcast %89 : vector<16x1xf32> to vector<16x16xf32>
    %91 = arith.divf %87, %90 : vector<16x16xf32>
    %92 = arith.truncf %91 : vector<16x16xf32> to vector<16x16xbf16>
    %cst_39 = arith.constant dense<0.000000e+00> : vector<16x16xf32>
    %93 = tpu.matmul %92, %78, %cst_39 {dimension_numbers = #tpu.dot_dimension_numbers<[1], [0], [0], [1], [0, 0, 1, 1], [], []>} : vector<16x16xbf16>, vector<16x16xbf16>, vector<16x16xf32> -> vector<16x16xf32>
    %94 = vector.extract_strided_slice %75 {offsets = [0, 16], sizes = [16, 16], strides = [1, 1]} : vector<16x96xbf16> to vector<16x16xbf16>
    %95 = vector.extract_strided_slice %75 {offsets = [0, 48], sizes = [16, 16], strides = [1, 1]} : vector<16x96xbf16> to vector<16x16xbf16>
    %96 = vector.extract_strided_slice %75 {offsets = [0, 80], sizes = [16, 16], strides = [1, 1]} : vector<16x96xbf16> to vector<16x16xbf16>
    %cst_40 = arith.constant dense<0.000000e+00> : vector<16x16xf32>
    %97 = tpu.matmul %94, %95, %cst_40 {dimension_numbers = #tpu.dot_dimension_numbers<[1], [1], [0], [0], [0, 0, 1, 0], [], []>} : vector<16x16xbf16>, vector<16x16xbf16>, vector<16x16xf32> -> vector<16x16xf32>
    %cst_41 = arith.constant 2.500000e-01 : f32
    %98 = vector.broadcast %cst_41 : f32 to vector<16x16xf32>
    %99 = arith.mulf %97, %98 : vector<16x16xf32>
    %100 = arith.addf %99, %0 : vector<16x16xf32>
    %cst_42 = arith.constant dense<0xFF800000> : vector<16xf32>
    %101 = vector.multi_reduction <maximumf>, %100, %cst_42 [1] : vector<16x16xf32> to vector<16xf32>
    %102 = vector.shape_cast %101 : vector<16xf32> to vector<16x1xf32>
    %103 = vector.broadcast %102 : vector<16x1xf32> to vector<16x16xf32>
    %104 = arith.subf %100, %103 : vector<16x16xf32>
    %105 = math.exp %104 : vector<16x16xf32>
    %cst_43 = arith.constant dense<0.000000e+00> : vector<16xf32>
    %106 = vector.multi_reduction <add>, %105, %cst_43 [1] : vector<16x16xf32> to vector<16xf32>
    %107 = vector.shape_cast %106 : vector<16xf32> to vector<16x1xf32>
    %108 = vector.broadcast %107 : vector<16x1xf32> to vector<16x16xf32>
    %109 = arith.divf %105, %108 : vector<16x16xf32>
    %110 = arith.truncf %109 : vector<16x16xf32> to vector<16x16xbf16>
    %cst_44 = arith.constant dense<0.000000e+00> : vector<16x16xf32>
    %111 = tpu.matmul %110, %96, %cst_44 {dimension_numbers = #tpu.dot_dimension_numbers<[1], [0], [0], [1], [0, 0, 1, 1], [], []>} : vector<16x16xbf16>, vector<16x16xbf16>, vector<16x16xf32> -> vector<16x16xf32>
    %112 = tpu.concatenate %93, %111 in 1 : vector<16x16xf32>, vector<16x16xf32> -> vector<16x32xf32>
    %113 = arith.truncf %112 : vector<16x32xf32> to vector<16x32xbf16>
    %114 = vector.extract_strided_slice %66 {offsets = [0, 96], sizes = [32, 32], strides = [1, 1]} : vector<32x192xbf16> to vector<32x32xbf16>
    %cst_45 = arith.constant dense<0.000000e+00> : vector<16x32xf32>
    %115 = tpu.matmul %113, %114, %cst_45 {dimension_numbers = #tpu.dot_dimension_numbers<[1], [0], [0], [1], [0, 0, 1, 1], [], []>} : vector<16x32xbf16>, vector<32x32xbf16>, vector<16x32xf32> -> vector<16x32xf32>
    %116 = vector.extract_strided_slice %68 {offsets = [1, 0], sizes = [1, 32], strides = [1, 1]} : vector<8x128xf32> to vector<1x32xf32>
    %117 = vector.broadcast %116 : vector<1x32xf32> to vector<16x32xf32>
    %118 = arith.addf %115, %117 : vector<16x32xf32>
    %119 = arith.addf %118, %64 : vector<16x32xf32>
    %120 = vector.extract_strided_slice %68 {offsets = [2, 0], sizes = [1, 32], strides = [1, 1]} : vector<8x128xf32> to vector<1x32xf32>
    %121 = vector.extract_strided_slice %68 {offsets = [3, 0], sizes = [1, 32], strides = [1, 1]} : vector<8x128xf32> to vector<1x32xf32>
    %cst_46 = arith.constant dense<0.000000e+00> : vector<16xf32>
    %122 = vector.multi_reduction <add>, %119, %cst_46 [1] : vector<16x32xf32> to vector<16xf32>
    %123 = vector.shape_cast %122 : vector<16xf32> to vector<16x1xf32>
    %cst_47 = arith.constant 3.200000e+01 : f32
    %124 = vector.broadcast %cst_47 : f32 to vector<16x1xf32>
    %125 = arith.divf %123, %124 : vector<16x1xf32>
    %126 = vector.broadcast %125 : vector<16x1xf32> to vector<16x32xf32>
    %127 = arith.subf %119, %126 : vector<16x32xf32>
    %128 = arith.mulf %127, %127 : vector<16x32xf32>
    %cst_48 = arith.constant dense<0.000000e+00> : vector<16xf32>
    %129 = vector.multi_reduction <add>, %128, %cst_48 [1] : vector<16x32xf32> to vector<16xf32>
    %130 = vector.shape_cast %129 : vector<16xf32> to vector<16x1xf32>
    %cst_49 = arith.constant 3.200000e+01 : f32
    %131 = vector.broadcast %cst_49 : f32 to vector<16x1xf32>
    %132 = arith.divf %130, %131 : vector<16x1xf32>
    %133 = vector.broadcast %125 : vector<16x1xf32> to vector<16x32xf32>
    %134 = arith.subf %119, %133 : vector<16x32xf32>
    %cst_50 = arith.constant 9.99999996E-13 : f32
    %135 = vector.broadcast %cst_50 : f32 to vector<16x1xf32>
    %136 = arith.addf %132, %135 : vector<16x1xf32>
    %137 = math.rsqrt %136 : vector<16x1xf32>
    %138 = vector.broadcast %137 : vector<16x1xf32> to vector<16x32xf32>
    %139 = arith.mulf %134, %138 : vector<16x32xf32>
    %140 = vector.broadcast %120 : vector<1x32xf32> to vector<16x32xf32>
    %141 = arith.mulf %139, %140 : vector<16x32xf32>
    %142 = vector.broadcast %121 : vector<1x32xf32> to vector<16x32xf32>
    %143 = arith.addf %141, %142 : vector<16x32xf32>
    %144 = arith.truncf %143 : vector<16x32xf32> to vector<16x32xbf16>
    %145 = vector.extract_strided_slice %66 {offsets = [0, 128], sizes = [32, 64], strides = [1, 1]} : vector<32x192xbf16> to vector<32x64xbf16>
    %cst_51 = arith.constant dense<0.000000e+00> : vector<16x64xf32>
    %146 = tpu.matmul %144, %145, %cst_51 {dimension_numbers = #tpu.dot_dimension_numbers<[1], [0], [0], [1], [0, 0, 1, 1], [], []>} : vector<16x32xbf16>, vector<32x64xbf16>, vector<16x64xf32> -> vector<16x64xf32>
    %147 = vector.extract_strided_slice %68 {offsets = [4, 0], sizes = [1, 64], strides = [1, 1]} : vector<8x128xf32> to vector<1x64xf32>
    %148 = vector.broadcast %147 : vector<1x64xf32> to vector<16x64xf32>
    %149 = arith.addf %146, %148 : vector<16x64xf32>
    %cst_52 = arith.constant 5.000000e-01 : f32
    %150 = vector.broadcast %cst_52 : f32 to vector<16x64xf32>
    %151 = arith.mulf %150, %149 : vector<16x64xf32>
    %cst_53 = arith.constant 4.471500e-02 : f32
    %152 = vector.broadcast %cst_53 : f32 to vector<16x64xf32>
    %153 = arith.mulf %152, %149 : vector<16x64xf32>
    %154 = arith.mulf %153, %149 : vector<16x64xf32>
    %155 = arith.mulf %154, %149 : vector<16x64xf32>
    %156 = arith.addf %149, %155 : vector<16x64xf32>
    %cst_54 = arith.constant 0.797884583 : f32
    %157 = vector.broadcast %cst_54 : f32 to vector<16x64xf32>
    %158 = arith.mulf %157, %156 : vector<16x64xf32>
    %159 = math.tanh %158 : vector<16x64xf32>
    %cst_55 = arith.constant 1.000000e+00 : f32
    %160 = vector.broadcast %cst_55 : f32 to vector<16x64xf32>
    %161 = arith.addf %160, %159 : vector<16x64xf32>
    %162 = arith.mulf %151, %161 : vector<16x64xf32>
    %163 = arith.truncf %162 : vector<16x64xf32> to vector<16x64xbf16>
    %c0_56 = arith.constant 0 : index
    %c0_57 = arith.constant 0 : index
    %c0_58 = arith.constant 0 : index
    %164 = vector.load %arg6[%c0_56, %c0_57, %c0_58] : memref<2x64x32xbf16, #tpu.memory_space<vmem>>, vector<1x64x32xbf16>
    %165 = vector.shape_cast %164 : vector<1x64x32xbf16> to vector<64x32xbf16>
    %cst_59 = arith.constant dense<0.000000e+00> : vector<16x32xf32>
    %166 = tpu.matmul %163, %165, %cst_59 {dimension_numbers = #tpu.dot_dimension_numbers<[1], [0], [0], [1], [0, 0, 1, 1], [], []>} : vector<16x64xbf16>, vector<64x32xbf16>, vector<16x32xf32> -> vector<16x32xf32>
    %167 = vector.extract_strided_slice %68 {offsets = [5, 0], sizes = [1, 32], strides = [1, 1]} : vector<8x128xf32> to vector<1x32xf32>
    %168 = vector.broadcast %167 : vector<1x32xf32> to vector<16x32xf32>
    %169 = arith.addf %166, %168 : vector<16x32xf32>
    %170 = arith.addf %169, %143 : vector<16x32xf32>
    %171 = vector.extract_strided_slice %68 {offsets = [6, 0], sizes = [1, 32], strides = [1, 1]} : vector<8x128xf32> to vector<1x32xf32>
    %172 = vector.extract_strided_slice %68 {offsets = [7, 0], sizes = [1, 32], strides = [1, 1]} : vector<8x128xf32> to vector<1x32xf32>
    %cst_60 = arith.constant dense<0.000000e+00> : vector<16xf32>
    %173 = vector.multi_reduction <add>, %170, %cst_60 [1] : vector<16x32xf32> to vector<16xf32>
    %174 = vector.shape_cast %173 : vector<16xf32> to vector<16x1xf32>
    %cst_61 = arith.constant 3.200000e+01 : f32
    %175 = vector.broadcast %cst_61 : f32 to vector<16x1xf32>
    %176 = arith.divf %174, %175 : vector<16x1xf32>
    %177 = vector.broadcast %176 : vector<16x1xf32> to vector<16x32xf32>
    %178 = arith.subf %170, %177 : vector<16x32xf32>
    %179 = arith.mulf %178, %178 : vector<16x32xf32>
    %cst_62 = arith.constant dense<0.000000e+00> : vector<16xf32>
    %180 = vector.multi_reduction <add>, %179, %cst_62 [1] : vector<16x32xf32> to vector<16xf32>
    %181 = vector.shape_cast %180 : vector<16xf32> to vector<16x1xf32>
    %cst_63 = arith.constant 3.200000e+01 : f32
    %182 = vector.broadcast %cst_63 : f32 to vector<16x1xf32>
    %183 = arith.divf %181, %182 : vector<16x1xf32>
    %184 = vector.broadcast %176 : vector<16x1xf32> to vector<16x32xf32>
    %185 = arith.subf %170, %184 : vector<16x32xf32>
    %cst_64 = arith.constant 9.99999996E-13 : f32
    %186 = vector.broadcast %cst_64 : f32 to vector<16x1xf32>
    %187 = arith.addf %183, %186 : vector<16x1xf32>
    %188 = math.rsqrt %187 : vector<16x1xf32>
    %189 = vector.broadcast %188 : vector<16x1xf32> to vector<16x32xf32>
    %190 = arith.mulf %185, %189 : vector<16x32xf32>
    %191 = vector.broadcast %171 : vector<1x32xf32> to vector<16x32xf32>
    %192 = arith.mulf %190, %191 : vector<16x32xf32>
    %193 = vector.broadcast %172 : vector<1x32xf32> to vector<16x32xf32>
    %194 = arith.addf %192, %193 : vector<16x32xf32>
    %c1 = arith.constant 1 : index
    %c0_65 = arith.constant 0 : index
    %c0_66 = arith.constant 0 : index
    %195 = vector.load %arg5[%c1, %c0_65, %c0_66] : memref<2x32x192xbf16, #tpu.memory_space<vmem>>, vector<1x32x192xbf16>
    %196 = vector.shape_cast %195 : vector<1x32x192xbf16> to vector<32x192xbf16>
    %c1_67 = arith.constant 1 : index
    %c0_68 = arith.constant 0 : index
    %c0_69 = arith.constant 0 : index
    %197 = vector.load %arg7[%c1_67, %c0_68, %c0_69] : memref<2x8x128xf32, #tpu.memory_space<vmem>>, vector<1x8x128xf32>
    %198 = vector.shape_cast %197 : vector<1x8x128xf32> to vector<8x128xf32>
    %199 = arith.truncf %194 : vector<16x32xf32> to vector<16x32xbf16>
    %200 = vector.extract_strided_slice %196 {offsets = [0, 0], sizes = [32, 96], strides = [1, 1]} : vector<32x192xbf16> to vector<32x96xbf16>
    %cst_70 = arith.constant dense<0.000000e+00> : vector<16x96xf32>
    %201 = tpu.matmul %199, %200, %cst_70 {dimension_numbers = #tpu.dot_dimension_numbers<[1], [0], [0], [1], [0, 0, 1, 1], [], []>} : vector<16x32xbf16>, vector<32x96xbf16>, vector<16x96xf32> -> vector<16x96xf32>
    %202 = vector.extract_strided_slice %198 {offsets = [0, 0], sizes = [1, 96], strides = [1, 1]} : vector<8x128xf32> to vector<1x96xf32>
    %203 = vector.broadcast %202 : vector<1x96xf32> to vector<16x96xf32>
    %204 = arith.addf %201, %203 : vector<16x96xf32>
    %205 = arith.truncf %204 : vector<16x96xf32> to vector<16x96xbf16>
    %206 = vector.extract_strided_slice %205 {offsets = [0, 0], sizes = [16, 16], strides = [1, 1]} : vector<16x96xbf16> to vector<16x16xbf16>
    %207 = vector.extract_strided_slice %205 {offsets = [0, 32], sizes = [16, 16], strides = [1, 1]} : vector<16x96xbf16> to vector<16x16xbf16>
    %208 = vector.extract_strided_slice %205 {offsets = [0, 64], sizes = [16, 16], strides = [1, 1]} : vector<16x96xbf16> to vector<16x16xbf16>
    %cst_71 = arith.constant dense<0.000000e+00> : vector<16x16xf32>
    %209 = tpu.matmul %206, %207, %cst_71 {dimension_numbers = #tpu.dot_dimension_numbers<[1], [1], [0], [0], [0, 0, 1, 0], [], []>} : vector<16x16xbf16>, vector<16x16xbf16>, vector<16x16xf32> -> vector<16x16xf32>
    %cst_72 = arith.constant 2.500000e-01 : f32
    %210 = vector.broadcast %cst_72 : f32 to vector<16x16xf32>
    %211 = arith.mulf %209, %210 : vector<16x16xf32>
    %212 = arith.addf %211, %0 : vector<16x16xf32>
    %cst_73 = arith.constant dense<0xFF800000> : vector<16xf32>
    %213 = vector.multi_reduction <maximumf>, %212, %cst_73 [1] : vector<16x16xf32> to vector<16xf32>
    %214 = vector.shape_cast %213 : vector<16xf32> to vector<16x1xf32>
    %215 = vector.broadcast %214 : vector<16x1xf32> to vector<16x16xf32>
    %216 = arith.subf %212, %215 : vector<16x16xf32>
    %217 = math.exp %216 : vector<16x16xf32>
    %cst_74 = arith.constant dense<0.000000e+00> : vector<16xf32>
    %218 = vector.multi_reduction <add>, %217, %cst_74 [1] : vector<16x16xf32> to vector<16xf32>
    %219 = vector.shape_cast %218 : vector<16xf32> to vector<16x1xf32>
    %220 = vector.broadcast %219 : vector<16x1xf32> to vector<16x16xf32>
    %221 = arith.divf %217, %220 : vector<16x16xf32>
    %222 = arith.truncf %221 : vector<16x16xf32> to vector<16x16xbf16>
    %cst_75 = arith.constant dense<0.000000e+00> : vector<16x16xf32>
    %223 = tpu.matmul %222, %208, %cst_75 {dimension_numbers = #tpu.dot_dimension_numbers<[1], [0], [0], [1], [0, 0, 1, 1], [], []>} : vector<16x16xbf16>, vector<16x16xbf16>, vector<16x16xf32> -> vector<16x16xf32>
    %224 = vector.extract_strided_slice %205 {offsets = [0, 16], sizes = [16, 16], strides = [1, 1]} : vector<16x96xbf16> to vector<16x16xbf16>
    %225 = vector.extract_strided_slice %205 {offsets = [0, 48], sizes = [16, 16], strides = [1, 1]} : vector<16x96xbf16> to vector<16x16xbf16>
    %226 = vector.extract_strided_slice %205 {offsets = [0, 80], sizes = [16, 16], strides = [1, 1]} : vector<16x96xbf16> to vector<16x16xbf16>
    %cst_76 = arith.constant dense<0.000000e+00> : vector<16x16xf32>
    %227 = tpu.matmul %224, %225, %cst_76 {dimension_numbers = #tpu.dot_dimension_numbers<[1], [1], [0], [0], [0, 0, 1, 0], [], []>} : vector<16x16xbf16>, vector<16x16xbf16>, vector<16x16xf32> -> vector<16x16xf32>
    %cst_77 = arith.constant 2.500000e-01 : f32
    %228 = vector.broadcast %cst_77 : f32 to vector<16x16xf32>
    %229 = arith.mulf %227, %228 : vector<16x16xf32>
    %230 = arith.addf %229, %0 : vector<16x16xf32>
    %cst_78 = arith.constant dense<0xFF800000> : vector<16xf32>
    %231 = vector.multi_reduction <maximumf>, %230, %cst_78 [1] : vector<16x16xf32> to vector<16xf32>
    %232 = vector.shape_cast %231 : vector<16xf32> to vector<16x1xf32>
    %233 = vector.broadcast %232 : vector<16x1xf32> to vector<16x16xf32>
    %234 = arith.subf %230, %233 : vector<16x16xf32>
    %235 = math.exp %234 : vector<16x16xf32>
    %cst_79 = arith.constant dense<0.000000e+00> : vector<16xf32>
    %236 = vector.multi_reduction <add>, %235, %cst_79 [1] : vector<16x16xf32> to vector<16xf32>
    %237 = vector.shape_cast %236 : vector<16xf32> to vector<16x1xf32>
    %238 = vector.broadcast %237 : vector<16x1xf32> to vector<16x16xf32>
    %239 = arith.divf %235, %238 : vector<16x16xf32>
    %240 = arith.truncf %239 : vector<16x16xf32> to vector<16x16xbf16>
    %cst_80 = arith.constant dense<0.000000e+00> : vector<16x16xf32>
    %241 = tpu.matmul %240, %226, %cst_80 {dimension_numbers = #tpu.dot_dimension_numbers<[1], [0], [0], [1], [0, 0, 1, 1], [], []>} : vector<16x16xbf16>, vector<16x16xbf16>, vector<16x16xf32> -> vector<16x16xf32>
    %242 = tpu.concatenate %223, %241 in 1 : vector<16x16xf32>, vector<16x16xf32> -> vector<16x32xf32>
    %243 = arith.truncf %242 : vector<16x32xf32> to vector<16x32xbf16>
    %244 = vector.extract_strided_slice %196 {offsets = [0, 96], sizes = [32, 32], strides = [1, 1]} : vector<32x192xbf16> to vector<32x32xbf16>
    %cst_81 = arith.constant dense<0.000000e+00> : vector<16x32xf32>
    %245 = tpu.matmul %243, %244, %cst_81 {dimension_numbers = #tpu.dot_dimension_numbers<[1], [0], [0], [1], [0, 0, 1, 1], [], []>} : vector<16x32xbf16>, vector<32x32xbf16>, vector<16x32xf32> -> vector<16x32xf32>
    %246 = vector.extract_strided_slice %198 {offsets = [1, 0], sizes = [1, 32], strides = [1, 1]} : vector<8x128xf32> to vector<1x32xf32>
    %247 = vector.broadcast %246 : vector<1x32xf32> to vector<16x32xf32>
    %248 = arith.addf %245, %247 : vector<16x32xf32>
    %249 = arith.addf %248, %194 : vector<16x32xf32>
    %250 = vector.extract_strided_slice %198 {offsets = [2, 0], sizes = [1, 32], strides = [1, 1]} : vector<8x128xf32> to vector<1x32xf32>
    %251 = vector.extract_strided_slice %198 {offsets = [3, 0], sizes = [1, 32], strides = [1, 1]} : vector<8x128xf32> to vector<1x32xf32>
    %cst_82 = arith.constant dense<0.000000e+00> : vector<16xf32>
    %252 = vector.multi_reduction <add>, %249, %cst_82 [1] : vector<16x32xf32> to vector<16xf32>
    %253 = vector.shape_cast %252 : vector<16xf32> to vector<16x1xf32>
    %cst_83 = arith.constant 3.200000e+01 : f32
    %254 = vector.broadcast %cst_83 : f32 to vector<16x1xf32>
    %255 = arith.divf %253, %254 : vector<16x1xf32>
    %256 = vector.broadcast %255 : vector<16x1xf32> to vector<16x32xf32>
    %257 = arith.subf %249, %256 : vector<16x32xf32>
    %258 = arith.mulf %257, %257 : vector<16x32xf32>
    %cst_84 = arith.constant dense<0.000000e+00> : vector<16xf32>
    %259 = vector.multi_reduction <add>, %258, %cst_84 [1] : vector<16x32xf32> to vector<16xf32>
    %260 = vector.shape_cast %259 : vector<16xf32> to vector<16x1xf32>
    %cst_85 = arith.constant 3.200000e+01 : f32
    %261 = vector.broadcast %cst_85 : f32 to vector<16x1xf32>
    %262 = arith.divf %260, %261 : vector<16x1xf32>
    %263 = vector.broadcast %255 : vector<16x1xf32> to vector<16x32xf32>
    %264 = arith.subf %249, %263 : vector<16x32xf32>
    %cst_86 = arith.constant 9.99999996E-13 : f32
    %265 = vector.broadcast %cst_86 : f32 to vector<16x1xf32>
    %266 = arith.addf %262, %265 : vector<16x1xf32>
    %267 = math.rsqrt %266 : vector<16x1xf32>
    %268 = vector.broadcast %267 : vector<16x1xf32> to vector<16x32xf32>
    %269 = arith.mulf %264, %268 : vector<16x32xf32>
    %270 = vector.broadcast %250 : vector<1x32xf32> to vector<16x32xf32>
    %271 = arith.mulf %269, %270 : vector<16x32xf32>
    %272 = vector.broadcast %251 : vector<1x32xf32> to vector<16x32xf32>
    %273 = arith.addf %271, %272 : vector<16x32xf32>
    %274 = arith.truncf %273 : vector<16x32xf32> to vector<16x32xbf16>
    %275 = vector.extract_strided_slice %196 {offsets = [0, 128], sizes = [32, 64], strides = [1, 1]} : vector<32x192xbf16> to vector<32x64xbf16>
    %cst_87 = arith.constant dense<0.000000e+00> : vector<16x64xf32>
    %276 = tpu.matmul %274, %275, %cst_87 {dimension_numbers = #tpu.dot_dimension_numbers<[1], [0], [0], [1], [0, 0, 1, 1], [], []>} : vector<16x32xbf16>, vector<32x64xbf16>, vector<16x64xf32> -> vector<16x64xf32>
    %277 = vector.extract_strided_slice %198 {offsets = [4, 0], sizes = [1, 64], strides = [1, 1]} : vector<8x128xf32> to vector<1x64xf32>
    %278 = vector.broadcast %277 : vector<1x64xf32> to vector<16x64xf32>
    %279 = arith.addf %276, %278 : vector<16x64xf32>
    %cst_88 = arith.constant 5.000000e-01 : f32
    %280 = vector.broadcast %cst_88 : f32 to vector<16x64xf32>
    %281 = arith.mulf %280, %279 : vector<16x64xf32>
    %cst_89 = arith.constant 4.471500e-02 : f32
    %282 = vector.broadcast %cst_89 : f32 to vector<16x64xf32>
    %283 = arith.mulf %282, %279 : vector<16x64xf32>
    %284 = arith.mulf %283, %279 : vector<16x64xf32>
    %285 = arith.mulf %284, %279 : vector<16x64xf32>
    %286 = arith.addf %279, %285 : vector<16x64xf32>
    %cst_90 = arith.constant 0.797884583 : f32
    %287 = vector.broadcast %cst_90 : f32 to vector<16x64xf32>
    %288 = arith.mulf %287, %286 : vector<16x64xf32>
    %289 = math.tanh %288 : vector<16x64xf32>
    %cst_91 = arith.constant 1.000000e+00 : f32
    %290 = vector.broadcast %cst_91 : f32 to vector<16x64xf32>
    %291 = arith.addf %290, %289 : vector<16x64xf32>
    %292 = arith.mulf %281, %291 : vector<16x64xf32>
    %293 = arith.truncf %292 : vector<16x64xf32> to vector<16x64xbf16>
    %c1_92 = arith.constant 1 : index
    %c0_93 = arith.constant 0 : index
    %c0_94 = arith.constant 0 : index
    %294 = vector.load %arg6[%c1_92, %c0_93, %c0_94] : memref<2x64x32xbf16, #tpu.memory_space<vmem>>, vector<1x64x32xbf16>
    %295 = vector.shape_cast %294 : vector<1x64x32xbf16> to vector<64x32xbf16>
    %cst_95 = arith.constant dense<0.000000e+00> : vector<16x32xf32>
    %296 = tpu.matmul %293, %295, %cst_95 {dimension_numbers = #tpu.dot_dimension_numbers<[1], [0], [0], [1], [0, 0, 1, 1], [], []>} : vector<16x64xbf16>, vector<64x32xbf16>, vector<16x32xf32> -> vector<16x32xf32>
    %297 = vector.extract_strided_slice %198 {offsets = [5, 0], sizes = [1, 32], strides = [1, 1]} : vector<8x128xf32> to vector<1x32xf32>
    %298 = vector.broadcast %297 : vector<1x32xf32> to vector<16x32xf32>
    %299 = arith.addf %296, %298 : vector<16x32xf32>
    %300 = arith.addf %299, %273 : vector<16x32xf32>
    %301 = vector.extract_strided_slice %198 {offsets = [6, 0], sizes = [1, 32], strides = [1, 1]} : vector<8x128xf32> to vector<1x32xf32>
    %302 = vector.extract_strided_slice %198 {offsets = [7, 0], sizes = [1, 32], strides = [1, 1]} : vector<8x128xf32> to vector<1x32xf32>
    %cst_96 = arith.constant dense<0.000000e+00> : vector<16xf32>
    %303 = vector.multi_reduction <add>, %300, %cst_96 [1] : vector<16x32xf32> to vector<16xf32>
    %304 = vector.shape_cast %303 : vector<16xf32> to vector<16x1xf32>
    %cst_97 = arith.constant 3.200000e+01 : f32
    %305 = vector.broadcast %cst_97 : f32 to vector<16x1xf32>
    %306 = arith.divf %304, %305 : vector<16x1xf32>
    %307 = vector.broadcast %306 : vector<16x1xf32> to vector<16x32xf32>
    %308 = arith.subf %300, %307 : vector<16x32xf32>
    %309 = arith.mulf %308, %308 : vector<16x32xf32>
    %cst_98 = arith.constant dense<0.000000e+00> : vector<16xf32>
    %310 = vector.multi_reduction <add>, %309, %cst_98 [1] : vector<16x32xf32> to vector<16xf32>
    %311 = vector.shape_cast %310 : vector<16xf32> to vector<16x1xf32>
    %cst_99 = arith.constant 3.200000e+01 : f32
    %312 = vector.broadcast %cst_99 : f32 to vector<16x1xf32>
    %313 = arith.divf %311, %312 : vector<16x1xf32>
    %314 = vector.broadcast %306 : vector<16x1xf32> to vector<16x32xf32>
    %315 = arith.subf %300, %314 : vector<16x32xf32>
    %cst_100 = arith.constant 9.99999996E-13 : f32
    %316 = vector.broadcast %cst_100 : f32 to vector<16x1xf32>
    %317 = arith.addf %313, %316 : vector<16x1xf32>
    %318 = math.rsqrt %317 : vector<16x1xf32>
    %319 = vector.broadcast %318 : vector<16x1xf32> to vector<16x32xf32>
    %320 = arith.mulf %315, %319 : vector<16x32xf32>
    %321 = vector.broadcast %301 : vector<1x32xf32> to vector<16x32xf32>
    %322 = arith.mulf %320, %321 : vector<16x32xf32>
    %323 = vector.broadcast %302 : vector<1x32xf32> to vector<16x32xf32>
    %324 = arith.addf %322, %323 : vector<16x32xf32>
    %325 = arith.truncf %324 : vector<16x32xf32> to vector<16x32xbf16>
    %c112 = arith.constant 112 : index
    %c0_101 = arith.constant 0 : index
    %326 = vector.load %arg2[%c112, %c0_101] : memref<144x32xbf16, #tpu.memory_space<vmem>>, vector<32x32xbf16>
    %cst_102 = arith.constant dense<0.000000e+00> : vector<16x32xf32>
    %327 = tpu.matmul %325, %326, %cst_102 {dimension_numbers = #tpu.dot_dimension_numbers<[1], [0], [0], [1], [0, 0, 1, 1], [], []>} : vector<16x32xbf16>, vector<32x32xbf16>, vector<16x32xf32> -> vector<16x32xf32>
    %c22 = arith.constant 22 : index
    %c0_103 = arith.constant 0 : index
    %328 = vector.load %arg4[%c22, %c0_103] : memref<56x128xf32, #tpu.memory_space<vmem>>, vector<1x32xf32>
    %329 = vector.broadcast %328 : vector<1x32xf32> to vector<16x32xf32>
    %330 = arith.addf %327, %329 : vector<16x32xf32>
    %331 = math.tanh %330 : vector<16x32xf32>
    %332 = arith.truncf %331 : vector<16x32xf32> to vector<16x32xbf16>
    %c0_104 = arith.constant 0 : index
    %c0_105 = arith.constant 0 : index
    %333 = vector.load %arg3[%c0_104, %c0_105] : memref<32x128xbf16, #tpu.memory_space<vmem>>, vector<32x128xbf16>
    %cst_106 = arith.constant dense<0.000000e+00> : vector<16x128xf32>
    %334 = tpu.matmul %332, %333, %cst_106 {dimension_numbers = #tpu.dot_dimension_numbers<[1], [0], [0], [1], [0, 0, 1, 1], [], []>} : vector<16x32xbf16>, vector<32x128xbf16>, vector<16x128xf32> -> vector<16x128xf32>
    %c23 = arith.constant 23 : index
    %c0_107 = arith.constant 0 : index
    %335 = vector.load %arg4[%c23, %c0_107] : memref<56x128xf32, #tpu.memory_space<vmem>>, vector<1x128xf32>
    %336 = vector.broadcast %335 : vector<1x128xf32> to vector<16x128xf32>
    %337 = arith.addf %334, %336 : vector<16x128xf32>
    %c0_108 = arith.constant 0 : index
    %c0_109 = arith.constant 0 : index
    %338 = vector.load %arg8[%c0_108, %c0_109] : memref<16x128xf32, #tpu.memory_space<vmem>>, vector<16x128xf32>
    tpu.vector_store %arg8[%c0_108, %c0_109], %337 {strides = array<i32>} : memref<16x128xf32, #tpu.memory_space<vmem>>, vector<16x128xf32>,
    return
  }
}

</mosaic_0001>

<llo_original>
// kernel: rings_net_forward.1
$region0: #{rings_net_forward.1}
  #allocation0 [shape = 'u32[]', space=smem, size = 0x4, offset = 0x4, fixed_abs, tag = 'smem constant byte address 0x4 - core index']
  #allocation1 [shape = 'u32[144,128]{1,0:T(1,128)}', space=vmem, size = 0x12000, scoped, tag = 'internal scratch']
  %s0 = inlined_call_operand.vmem [shape: f32[16,32], index: 0, kind: input, shape index: {}]
  %s1 = inlined_call_operand.vmem [shape: f32[2,16], index: 1, kind: input, shape index: {}]
  %s2 = inlined_call_operand.vmem [shape: bf16[144,32], index: 2, kind: input, shape index: {}]
  %s3 = inlined_call_operand.vmem [shape: bf16[32,128], index: 3, kind: input, shape index: {}]
  %s4 = inlined_call_operand.vmem [shape: f32[56,128], index: 4, kind: input, shape index: {}]
  %s5 = inlined_call_operand.vmem [shape: bf16[2,32,192], index: 5, kind: input, shape index: {}]
  %s6 = inlined_call_operand.vmem [shape: bf16[2,64,32], index: 6, kind: input, shape index: {}]
  %s7 = inlined_call_operand.vmem [shape: f32[2,8,128], index: 7, kind: input, shape index: {}]
  %s8 = inlined_call_operand.vmem [shape: f32[16,128], index: 8, kind: output, shape index: {}]
  %s9 = sld [smem:[#allocation0]]
  $region42: #{rings_net_forward.1} parent=0
    _
  %s11 = ssub.s32 1, %s9
  %s12 = scalar_select 0, %s11, %s9
  // Predicated region
  $region2: #{rings_net_forward.1} parent=0 // pred_check
    _
  $region3: #{rings_net_forward.1} parent=0 // pred_check_branch
    %14 = sbr.rel (0) target = $region5
  $region4: #{rings_net_forward.1} parent=0 // pred_region
    _
  $region5: #{rings_net_forward.1} parent=0 // pred_fallthru
    _
  // Predicated region
  $region6: #{rings_net_forward.1} parent=0 // pred_check
    _
  $region7: #{rings_net_forward.1} parent=0 // pred_check_branch
    %16 = sbr.rel (0) target = $region9
  $region8: #{rings_net_forward.1} parent=0 // pred_region
    _
  $region9: #{rings_net_forward.1} parent=0 // pred_fallthru
    _
  // Predicated region
  $region10: #{rings_net_forward.1} parent=0 // pred_check
    _
  $region11: #{rings_net_forward.1} parent=0 // pred_check_branch
    %18 = sbr.rel (0) target = $region13
  $region12: #{rings_net_forward.1} parent=0 // pred_region
    _
  $region13: #{rings_net_forward.1} parent=0 // pred_fallthru
    _
  // Predicated region
  $region14: #{rings_net_forward.1} parent=0 // pred_check
    _
  $region15: #{rings_net_forward.1} parent=0 // pred_check_branch
    %20 = sbr.rel (0) target = $region17
  $region16: #{rings_net_forward.1} parent=0 // pred_region
    _
  $region17: #{rings_net_forward.1} parent=0 // pred_fallthru
    _
  // Predicated region
  $region18: #{rings_net_forward.1} parent=0 // pred_check
    _
  $region19: #{rings_net_forward.1} parent=0 // pred_check_branch
    %22 = sbr.rel (0) target = $region21
  $region20: #{rings_net_forward.1} parent=0 // pred_region
    _
  $region21: #{rings_net_forward.1} parent=0 // pred_fallthru
    _
  // Predicated region
  $region22: #{rings_net_forward.1} parent=0 // pred_check
    _
  $region23: #{rings_net_forward.1} parent=0 // pred_check_branch
    %24 = sbr.rel (0) target = $region25
  $region24: #{rings_net_forward.1} parent=0 // pred_region
    _
  $region25: #{rings_net_forward.1} parent=0 // pred_fallthru
    _
  // Predicated region
  $region26: #{rings_net_forward.1} parent=0 // pred_check
    _
  $region27: #{rings_net_forward.1} parent=0 // pred_check_branch
    %26 = sbr.rel (0) target = $region29
  $region28: #{rings_net_forward.1} parent=0 // pred_region
    _
  $region29: #{rings_net_forward.1} parent=0 // pred_fallthru
    _
  // Predicated region
  $region30: #{rings_net_forward.1} parent=0 // pred_check
    _
  $region31: #{rings_net_forward.1} parent=0 // pred_check_branch
    %28 = sbr.rel (0) target = $region33
  $region32: #{rings_net_forward.1} parent=0 // pred_region
    _
  $region33: #{rings_net_forward.1} parent=0 // pred_fallthru
    _
  %v30 = vld [vmem:[%s4 + $0x18] sm:$0xff]
  %v31 = vld [vmem:[%s4 + $0x20] sm:$0xff]
  %v32 = vld [vmem:[%s4 + $0x28] sm:$0xff]
  %v33 = vld [vmem:[%s4 + $0x30] sm:$0xff]
  %v34 = vld [vmem:[%s4] sm:$0xff]
  %v35 = vld [vmem:[%s4 + $0x8] sm:$0xff]
  %v36 = vld [vmem:[%s1] sm:$0x3]
  %v37 = vpack.c.bf16 %v36, %v36
  %v38 = vld [vmem:[%s2 + $0x20] sm:$0xf]
  %v39 = vld [vmem:[%s2 + $0x24] sm:$0xf]
  %v40 = vld [vmem:[%s4 + $0x12] sm:$0x1]
  %v41 = vlaneseq
  %v42 = vshrl.u32 %v41, 7
  %v43 = vsub.s32 0, %v42
  %v44 = vrot.slane %v40, %v43
  %v47 = vunpack.c.l.b16 %v38
  %v48 = vunpack.c.l.b16 %v39
  %v49 = vpack.c.b16 %v48, %v47
  %vm51 = vcmask 130048
  %v53 = vsel %vm51, %v37, 0
  %55 = vmatprep.subr.bf16.mxu0 0
  %56 = vmatpush1.bf16.msra.mxu0 %v49
  %57 = vmatprep.subr.bf16.mxu0 0
  %58 = vmatpush1.bf16.msra.mxu0 0
  %59 = vmatprep.subr.bf16.mxu0 0
  %60 = vmatpush1.bf16.msra.mxu0 0
  %61 = vmatprep.subr.bf16.mxu0 0
  %62 = vmatpush1.bf16.msra.mxu0 0
  %63 = vmatprep.subr.bf16.mxu0 0
  %64 = vmatpush1.bf16.msra.mxu0 0
  %65 = vmatprep.subr.bf16.mxu0 0
  %66 = vmatpush1.bf16.msra.mxu0 0
  %67 = vmatprep.subr.bf16.mxu0 0
  %68 = vmatpush1.bf16.msra.mxu0 0
  %69 = vmatprep.subr.bf16.mxu0 0
  %70 = vmatpush1.bf16.msra.mxu0 0
  %71 = vmatprep.subr.bf16.mxu0 0
  %72 = vmatpush1.bf16.msra.mxu0 0
  %73 = vmatprep.subr.bf16.mxu0 0
  %74 = vmatpush1.bf16.msra.mxu0 0
  %75 = vmatprep.subr.bf16.mxu0 0
  %76 = vmatpush1.bf16.msra.mxu0 0
  %77 = vmatprep.subr.bf16.mxu0 0
  %78 = vmatpush1.bf16.msra.mxu0 0
  %79 = vmatprep.subr.bf16.mxu0 0
  %80 = vmatpush1.bf16.msra.mxu0 0
  %81 = vmatprep.subr.bf16.mxu0 0
  %82 = vmatpush1.bf16.msra.mxu0 0
  %83 = vmatprep.subr.bf16.mxu0 0
  %84 = vmatpush1.bf16.msra.mxu0 0
  %85 = vmatprep.subr.bf16.mxu0 0
  %86 = vmatpush1.bf16.msra.mxu0 0
  %87 = vmatprep.mubr.bf16.mxu0 0
  %88 = vmatmul.mubr.bf16.gmra.mrb[0].mxu0 %v53
  %v89 = vpop.f32.mrb[0].mxu0
  %v90 = vadd.f32 %v44, %v89
  %v91 = vpop.f32.mrb[0].mxu0
  %v92 = vpop.f32.mrb[0].mxu0
  %v93 = vpop.f32.mrb[0].mxu0
  %94 = vdwg.mxu0
  %v95 = vxor.u32 %v90, 2147483648
  %v96 = vmul.f32 %v95, 1.442695
  %v97 = vpow.pop %v96
  %v98 = vadd.f32 %v97, 1.0
  %v99 = vrcp.pop %v98
  %v100 = vmul.f32 1.0, %v99
  %v101 = vmul.f32 %v90, %v100
  %v102 = vpack.c.bf16 %v101, %v101
  %v103 = vld [vmem:[%s2 + $0x28] sm:$0xf]
  %v104 = vld [vmem:[%s2 + $0x2c] sm:$0xf]
  %v105 = vld [vmem:[%s2 + $0x30] sm:$0xf]
  %v106 = vld [vmem:[%s2 + $0x34] sm:$0xf]
  %v107 = vld [vmem:[%s4 + $0x13] sm:$0x1]
  %v108 = vlaneseq
  %v109 = vshrl.u32 %v108, 7
  %v110 = vsub.s32 0, %v109
  %v111 = vrot.slane %v107, %v110
  %v116 = vunpack.c.l.b16 %v103
  %v117 = vunpack.c.l.b16 %v104
  %v118 = vunpack.c.l.b16 %v105
  %v119 = vunpack.c.l.b16 %v106
  %v120 = vpack.c.b16 %v117, %v116
  %v121 = vpack.c.b16 %v119, %v118
  %vm124 = vcmask 261120
  %v126 = vsel %vm124, %v102, 0
  %128 = vmatprep.subr.bf16.mxu0 0
  %129 = vmatpush1.bf16.msra.mxu0 %v120
  %130 = vmatprep.subr.bf16.mxu0 0
  %131 = vmatpush1.bf16.msra.mxu0 %v121
  %132 = vmatprep.subr.bf16.mxu0 0
  %133 = vmatpush1.bf16.msra.mxu0 0
  %134 = vmatprep.subr.bf16.mxu0 0
  %135 = vmatpush1.bf16.msra.mxu0 0
  %136 = vmatprep.subr.bf16.mxu0 0
  %137 = vmatpush1.bf16.msra.mxu0 0
  %138 = vmatprep.subr.bf16.mxu0 0
  %139 = vmatpush1.bf16.msra.mxu0 0
  %140 = vmatprep.subr.bf16.mxu0 0
  %141 = vmatpush1.bf16.msra.mxu0 0
  %142 = vmatprep.subr.bf16.mxu0 0
  %143 = vmatpush1.bf16.msra.mxu0 0
  %144 = vmatprep.subr.bf16.mxu0 0
  %145 = vmatpush1.bf16.msra.mxu0 0
  %146 = vmatprep.subr.bf16.mxu0 0
  %147 = vmatpush1.bf16.msra.mxu0 0
  %148 = vmatprep.subr.bf16.mxu0 0
  %149 = vmatpush1.bf16.msra.mxu0 0
  %150 = vmatprep.subr.bf16.mxu0 0
  %151 = vmatpush1.bf16.msra.mxu0 0
  %152 = vmatprep.subr.bf16.mxu0 0
  %153 = vmatpush1.bf16.msra.mxu0 0
  %154 = vmatprep.subr.bf16.mxu0 0
  %155 = vmatpush1.bf16.msra.mxu0 0
  %156 = vmatprep.subr.bf16.mxu0 0
  %157 = vmatpush1.bf16.msra.mxu0 0
  %158 = vmatprep.subr.bf16.mxu0 0
  %159 = vmatpush1.bf16.msra.mxu0 0
  %160 = vmatprep.mubr.bf16.mxu0 0
  %161 = vmatmul.mubr.bf16.gmra.mrb[0].mxu0 %v126
  %v162 = vpop.f32.mrb[0].mxu0
  %v163 = vadd.f32 %v111, %v162
  %v164 = vpop.f32.mrb[0].mxu0
  %v165 = vpop.f32.mrb[0].mxu0
  %v166 = vpop.f32.mrb[0].mxu0
  %167 = vdwg.mxu0
  %v168 = vpack.c.bf16 %v33, %v32
  %v169 = vpack.c.bf16 %v163, %v163
  %vm170 = vcmask 15360
  %v172 = vsel %vm170, %v168, 0
  %vm174 = vcmask 1040384
  %v176 = vsel %vm174, %v169, 0
  %178 = vmatprep.subr.bf16.mxu0 0
  %179 = vmatpush1.bf16.msra.mxu0 %v176
  %180 = vmatprep.subr.bf16.mxu0 0
  %181 = vmatpush1.bf16.msra.mxu0 0
  %182 = vmatprep.subr.bf16.mxu0 0
  %183 = vmatpush1.bf16.msra.mxu0 0
  %184 = vmatprep.subr.bf16.mxu0 0
  %185 = vmatpush1.bf16.msra.mxu0 0
  %186 = vmatprep.subr.bf16.mxu0 0
  %187 = vmatpush1.bf16.msra.mxu0 0
  %188 = vmatprep.subr.bf16.mxu0 0
  %189 = vmatpush1.bf16.msra.mxu0 0
  %190 = vmatprep.subr.bf16.mxu0 0
  %191 = vmatpush1.bf16.msra.mxu0 0
  %192 = vmatprep.subr.bf16.mxu0 0
  %193 = vmatpush1.bf16.msra.mxu0 0
  %194 = vmatprep.subr.bf16.mxu0 0
  %195 = vmatpush1.bf16.msra.mxu0 0
  %196 = vmatprep.subr.bf16.mxu0 0
  %197 = vmatpush1.bf16.msra.mxu0 0
  %198 = vmatprep.subr.bf16.mxu0 0
  %199 = vmatpush1.bf16.msra.mxu0 0
  %200 = vmatprep.subr.bf16.mxu0 0
  %201 = vmatpush1.bf16.msra.mxu0 0
  %202 = vmatprep.subr.bf16.mxu0 0
  %203 = vmatpush1.bf16.msra.mxu0 0
  %204 = vmatprep.subr.bf16.mxu0 0
  %205 = vmatpush1.bf16.msra.mxu0 0
  %206 = vmatprep.subr.bf16.mxu0 0
  %207 = vmatpush1.bf16.msra.mxu0 0
  %208 = vmatprep.subr.bf16.mxu0 0
  %209 = vmatpush1.bf16.msra.mxu0 0
  %210 = vmatprep.mubr.bf16.mxu0 0
  %211 = vmatmul.mubr.bf16.gmra.mrb[0].mxu0 %v172
  %v212 = vpop.f32.mrb[0].mxu0
  %v213 = vadd.f32 0.0, %v212
  %v214 = vpop.f32.mrb[0].mxu0
  %v215 = vpop.f32.mrb[0].mxu0
  %v216 = vadd.f32 0.0, %v215
  %v217 = vpop.f32.mrb[0].mxu0
  %218 = vdwg.mxu0
  %v219 = vld [vmem:[%s0] sm:$0xff]
  %v220 = vld [vmem:[%s0 + $0x8] sm:$0xff]
  %v221 = vpack.c.bf16 %v220, %v219
  %v222 = vld [vmem:[%s2] sm:$0xf]
  %v223 = vld [vmem:[%s2 + $0x4] sm:$0xf]
  %v224 = vld [vmem:[%s2 + $0x8] sm:$0xf]
  %v225 = vld [vmem:[%s2 + $0xc] sm:$0xf]
  %v226 = vld [vmem:[%s4 + $0x10] sm:$0x1]
  %v227 = vlaneseq
  %v228 = vshrl.u32 %v227, 7
  %v229 = vsub.s32 0, %v228
  %v230 = vrot.slane %v226, %v229
  %v235 = vunpack.c.l.b16 %v222
  %v236 = vunpack.c.l.b16 %v223
  %v237 = vunpack.c.l.b16 %v224
  %v238 = vunpack.c.l.b16 %v225
  %v239 = vpack.c.b16 %v236, %v235
  %v240 = vpack.c.b16 %v238, %v237
  %v244 = vsel %vm124, %v221, 0
  %246 = vmatprep.subr.bf16.mxu0 0
  %247 = vmatpush1.bf16.msra.mxu0 %v239
  %248 = vmatprep.subr.bf16.mxu0 0
  %249 = vmatpush1.bf16.msra.mxu0 %v240
  %250 = vmatprep.subr.bf16.mxu0 0
  %251 = vmatpush1.bf16.msra.mxu0 0
  %252 = vmatprep.subr.bf16.mxu0 0
  %253 = vmatpush1.bf16.msra.mxu0 0
  %254 = vmatprep.subr.bf16.mxu0 0
  %255 = vmatpush1.bf16.msra.mxu0 0
  %256 = vmatprep.subr.bf16.mxu0 0
  %257 = vmatpush1.bf16.msra.mxu0 0
  %258 = vmatprep.subr.bf16.mxu0 0
  %259 = vmatpush1.bf16.msra.mxu0 0
  %260 = vmatprep.subr.bf16.mxu0 0
  %261 = vmatpush1.bf16.msra.mxu0 0
  %262 = vmatprep.subr.bf16.mxu0 0
  %263 = vmatpush1.bf16.msra.mxu0 0
  %264 = vmatprep.subr.bf16.mxu0 0
  %265 = vmatpush1.bf16.msra.mxu0 0
  %266 = vmatprep.subr.bf16.mxu0 0
  %267 = vmatpush1.bf16.msra.mxu0 0
  %268 = vmatprep.subr.bf16.mxu0 0
  %269 = vmatpush1.bf16.msra.mxu0 0
  %270 = vmatprep.subr.bf16.mxu0 0
  %271 = vmatpush1.bf16.msra.mxu0 0
  %272 = vmatprep.subr.bf16.mxu0 0
  %273 = vmatpush1.bf16.msra.mxu0 0
  %274 = vmatprep.subr.bf16.mxu0 0
  %275 = vmatpush1.bf16.msra.mxu0 0
  %276 = vmatprep.subr.bf16.mxu0 0
  %277 = vmatpush1.bf16.msra.mxu0 0
  %278 = vmatprep.mubr.bf16.mxu0 0
  %279 = vmatmul.mubr.bf16.gmra.mrb[0].mxu0 %v244
  %v280 = vpop.f32.mrb[0].mxu0
  %v281 = vadd.f32 %v230, %v280
  %v282 = vpop.f32.mrb[0].mxu0
  %v283 = vpop.f32.mrb[0].mxu0
  %v284 = vadd.f32 %v230, %v283
  %v285 = vpop.f32.mrb[0].mxu0
  %286 = vdwg.mxu0
  %v287 = vtanh.pop %v281
  %v288 = vtanh.pop %v284
  %v289 = vpack.c.bf16 %v288, %v287
  %v290 = vld [vmem:[%s2 + $0x10] sm:$0xf]
  %v291 = vld [vmem:[%s2 + $0x14] sm:$0xf]
  %v292 = vld [vmem:[%s2 + $0x18] sm:$0xf]
  %v293 = vld [vmem:[%s2 + $0x1c] sm:$0xf]
  %v294 = vld [vmem:[%s4 + $0x11] sm:$0x1]
  %v295 = vlaneseq
  %v296 = vshrl.u32 %v295, 7
  %v297 = vsub.s32 0, %v296
  %v298 = vrot.slane %v294, %v297
  %v303 = vunpack.c.l.b16 %v290
  %v304 = vunpack.c.l.b16 %v291
  %v305 = vunpack.c.l.b16 %v292
  %v306 = vunpack.c.l.b16 %v293
  %v307 = vpack.c.b16 %v304, %v303
  %v308 = vpack.c.b16 %v306, %v305
  %v312 = vsel %vm124, %v289, 0
  %314 = vmatprep.subr.bf16.mxu0 0
  %315 = vmatpush1.bf16.msra.mxu0 %v307
  %316 = vmatprep.subr.bf16.mxu0 0
  %317 = vmatpush1.bf16.msra.mxu0 %v308
  %318 = vmatprep.subr.bf16.mxu0 0
  %319 = vmatpush1.bf16.msra.mxu0 0
  %320 = vmatprep.subr.bf16.mxu0 0
  %321 = vmatpush1.bf16.msra.mxu0 0
  %322 = vmatprep.subr.bf16.mxu0 0
  %323 = vmatpush1.bf16.msra.mxu0 0
  %324 = vmatprep.subr.bf16.mxu0 0
  %325 = vmatpush1.bf16.msra.mxu0 0
  %326 = vmatprep.subr.bf16.mxu0 0
  %327 = vmatpush1.bf16.msra.mxu0 0
  %328 = vmatprep.subr.bf16.mxu0 0
  %329 = vmatpush1.bf16.msra.mxu0 0
  %330 = vmatprep.subr.bf16.mxu0 0
  %331 = vmatpush1.bf16.msra.mxu0 0
  %332 = vmatprep.subr.bf16.mxu0 0
  %333 = vmatpush1.bf16.msra.mxu0 0
  %334 = vmatprep.subr.bf16.mxu0 0
  %335 = vmatpush1.bf16.msra.mxu0 0
  %336 = vmatprep.subr.bf16.mxu0 0
  %337 = vmatpush1.bf16.msra.mxu0 0
  %338 = vmatprep.subr.bf16.mxu0 0
  %339 = vmatpush1.bf16.msra.mxu0 0
  %340 = vmatprep.subr.bf16.mxu0 0
  %341 = vmatpush1.bf16.msra.mxu0 0
  %342 = vmatprep.subr.bf16.mxu0 0
  %343 = vmatpush1.bf16.msra.mxu0 0
  %344 = vmatprep.subr.bf16.mxu0 0
  %345 = vmatpush1.bf16.msra.mxu0 0
  %346 = vmatprep.mubr.bf16.mxu0 0
  %347 = vmatmul.mubr.bf16.gmra.mrb[0].mxu0 %v312
  %v348 = vpop.f32.mrb[0].mxu0
  %v349 = vadd.f32 %v298, %v348
  %v350 = vpop.f32.mrb[0].mxu0
  %v351 = vpop.f32.mrb[0].mxu0
  %v352 = vadd.f32 %v298, %v351
  %v353 = vpop.f32.mrb[0].mxu0
  %354 = vdwg.mxu0
  %v355 = vadd.f32 %v349, %v34
  %v356 = vadd.f32 %v352, %v35
  %v357 = vadd.f32 %v355, %v213
  %v358 = vadd.f32 %v356, %v216
  %v359 = vld [vmem:[%s4 + $0x14] sm:$0x1]
  %v360 = vld [vmem:[%s4 + $0x15] sm:$0x1]
  %v361 = vsel %vm124, %v357, 0.0
  %362 = vadd.xlane.f32.xlu0 %v361
  %v363 = vpop.xlane.xlu0 %362
  %v364 = vsel %vm124, %v358, 0.0
  %365 = vadd.xlane.f32.xlu0 %v364
  %v366 = vpop.xlane.xlu0 %365
  %v367 = vrcp.pop 32.0
  %v368 = vmul.f32 %v363, %v367
  %v369 = vmul.f32 %v366, %v367
  %v370 = vsub.f32 %v357, %v368
  %v371 = vsub.f32 %v358, %v369
  %v372 = vmul.f32 %v370, %v370
  %v373 = vmul.f32 %v371, %v371
  %v374 = vsel %vm124, %v372, 0.0
  %375 = vadd.xlane.f32.xlu0 %v374
  %v376 = vpop.xlane.xlu0 %375
  %v377 = vsel %vm124, %v373, 0.0
  %378 = vadd.xlane.f32.xlu0 %v377
  %v379 = vpop.xlane.xlu0 %378
  %v380 = vmul.f32 %v376, %v367
  %v381 = vmul.f32 %v379, %v367
  %v382 = vadd.f32 %v380, 1e-12
  %v383 = vadd.f32 %v381, 1e-12
  %v384 = vrsqrt.pop %v382
  %v385 = vrsqrt.pop %v383
  %v386 = vmul.f32 %v370, %v384
  %v387 = vmul.f32 %v371, %v385
  %v388 = vlaneseq
  %v389 = vshrl.u32 %v388, 7
  %v390 = vsub.s32 0, %v389
  %v391 = vrot.slane %v359, %v390
  %v392 = vmul.f32 %v386, %v391
  %v393 = vmul.f32 %v387, %v391
  %v394 = vlaneseq
  %v395 = vshrl.u32 %v394, 7
  %v396 = vsub.s32 0, %v395
  %v397 = vrot.slane %v360, %v396
  %v398 = vadd.f32 %v392, %v397
  %v399 = vadd.f32 %v393, %v397
  %v400 = vld [vmem:[%s5] sm:$0xff]
  %v401 = vld [vmem:[%s5 + $0x8] sm:$0xff]
  %v402 = vld [vmem:[%s5 + $0x10] sm:$0xff]
  %v403 = vld [vmem:[%s5 + $0x18] sm:$0xff]
  %v404 = vld [vmem:[%s7] sm:$0xff]
  %v405 = vpack.c.bf16 %v399, %v398
  %v406 = vlaneseq
  %v407 = vshrl.u32 %v406, 7
  %v408 = vsub.s32 0, %v407
  %v409 = vrot.slane %v404, %v408
  %v414 = vunpack.c.l.b16 %v400
  %v415 = vunpack.c.l.b16 %v401
  %v416 = vunpack.c.l.b16 %v402
  %v417 = vunpack.c.l.b16 %v403
  %v418 = vpack.c.b16 %v415, %v414
  %v419 = vpack.c.b16 %v417, %v416
  %v423 = vsel %vm124, %v405, 0
  %425 = vmatprep.subr.bf16.mxu0 0
  %426 = vmatpush1.bf16.msra.mxu0 %v418
  %427 = vmatprep.subr.bf16.mxu0 0
  %428 = vmatpush1.bf16.msra.mxu0 %v419
  %429 = vmatprep.subr.bf16.mxu0 0
  %430 = vmatpush1.bf16.msra.mxu0 0
  %431 = vmatprep.subr.bf16.mxu0 0
  %432 = vmatpush1.bf16.msra.mxu0 0
  %433 = vmatprep.subr.bf16.mxu0 0
  %434 = vmatpush1.bf16.msra.mxu0 0
  %435 = vmatprep.subr.bf16.mxu0 0
  %436 = vmatpush1.bf16.msra.mxu0 0
  %437 = vmatprep.subr.bf16.mxu0 0
  %438 = vmatpush1.bf16.msra.mxu0 0
  %439 = vmatprep.subr.bf16.mxu0 0
  %440 = vmatpush1.bf16.msra.mxu0 0
  %441 = vmatprep.subr.bf16.mxu0 0
  %442 = vmatpush1.bf16.msra.mxu0 0
  %443 = vmatprep.subr.bf16.mxu0 0
  %444 = vmatpush1.bf16.msra.mxu0 0
  %445 = vmatprep.subr.bf16.mxu0 0
  %446 = vmatpush1.bf16.msra.mxu0 0
  %447 = vmatprep.subr.bf16.mxu0 0
  %448 = vmatpush1.bf16.msra.mxu0 0
  %449 = vmatprep.subr.bf16.mxu0 0
  %450 = vmatpush1.bf16.msra.mxu0 0
  %451 = vmatprep.subr.bf16.mxu0 0
  %452 = vmatpush1.bf16.msra.mxu0 0
  %453 = vmatprep.subr.bf16.mxu0 0
  %454 = vmatpush1.bf16.msra.mxu0 0
  %455 = vmatprep.subr.bf16.mxu0 0
  %456 = vmatpush1.bf16.msra.mxu0 0
  %457 = vmatprep.mubr.bf16.mxu0 0
  %458 = vmatmul.mubr.bf16.gmra.mrb[0].mxu0 %v423
  %v459 = vpop.f32.mrb[0].mxu0
  %v460 = vadd.f32 %v409, %v459
  %v461 = vpop.f32.mrb[0].mxu0
  %v462 = vpop.f32.mrb[0].mxu0
  %v463 = vadd.f32 %v409, %v462
  %v464 = vpop.f32.mrb[0].mxu0
  %465 = vdwg.mxu0
  %v466 = vpack.c.bf16 %v463, %v460
  %468 = vrot.lane.b32.xlu0 %v466, 96
  %v469 = vpop.permute.xlu0 %468
  %v471 = vsel %vm51, %v466, 0
  %v474 = vsel %vm51, %v469, 0
  %476 = vmatprep.subr.bf16.mxu0 0
  %477 = vmatpush1.bf16.xpose.msra.mxu0 %v474
  %478 = vmatprep.subr.bf16.mxu0 0
  %479 = vmatpush1.bf16.xpose.msra.mxu0 0
  %480 = vmatprep.subr.bf16.mxu0 0
  %481 = vmatpush1.bf16.xpose.msra.mxu0 0
  %482 = vmatprep.subr.bf16.mxu0 0
  %483 = vmatpush1.bf16.xpose.msra.mxu0 0
  %484 = vmatprep.subr.bf16.mxu0 0
  %485 = vmatpush1.bf16.xpose.msra.mxu0 0
  %486 = vmatprep.subr.bf16.mxu0 0
  %487 = vmatpush1.bf16.xpose.msra.mxu0 0
  %488 = vmatprep.subr.bf16.mxu0 0
  %489 = vmatpush1.bf16.xpose.msra.mxu0 0
  %490 = vmatprep.subr.bf16.mxu0 0
  %491 = vmatpush1.bf16.xpose.msra.mxu0 0
  %492 = vmatprep.subr.bf16.mxu0 0
  %493 = vmatpush1.bf16.xpose.msra.mxu0 0
  %494 = vmatprep.subr.bf16.mxu0 0
  %495 = vmatpush1.bf16.xpose.msra.mxu0 0
  %496 = vmatprep.subr.bf16.mxu0 0
  %497 = vmatpush1.bf16.xpose.msra.mxu0 0
  %498 = vmatprep.subr.bf16.mxu0 0
  %499 = vmatpush1.bf16.xpose.msra.mxu0 0
  %500 = vmatprep.subr.bf16.mxu0 0
  %501 = vmatpush1.bf16.xpose.msra.mxu0 0
  %502 = vmatprep.subr.bf16.mxu0 0
  %503 = vmatpush1.bf16.xpose.msra.mxu0 0
  %504 = vmatprep.subr.bf16.mxu0 0
  %505 = vmatpush1.bf16.xpose.msra.mxu0 0
  %506 = vmatprep.subr.bf16.mxu0 0
  %507 = vmatpush1.bf16.xpose.msra.mxu0 0
  %508 = vmatprep.mubr.bf16.mxu0 0
  %509 = vmatmul.mubr.bf16.gmra.mrb[0].mxu0 %v471
  %v510 = vpop.f32.mrb[0].mxu0
  %v511 = vadd.f32 0.0, %v510
  %v512 = vpop.f32.mrb[0].mxu0
  %v513 = vpop.f32.mrb[0].mxu0
  %v514 = vadd.f32 0.0, %v513
  %v515 = vpop.f32.mrb[0].mxu0
  %516 = vdwg.mxu0
  %v517 = vmul.f32 %v511, 0.25
  %v518 = vmul.f32 %v514, 0.25
  %v519 = vadd.f32 %v517, %v30
  %v520 = vadd.f32 %v518, %v31
  %v521 = vsel %vm51, %v519, -inf
  %522 = vmax.xlane.f32.xlu0 %v521
  %v523 = vpop.xlane.xlu0 %522
  %v524 = vsel %vm51, %v520, -inf
  %525 = vmax.xlane.f32.xlu0 %v524
  %v526 = vpop.xlane.xlu0 %525
  %v527 = vsub.f32 %v519, %v523
  %v528 = vsub.f32 %v520, %v526
  %v529 = vmul.f32 %v527, 1.442695
  %v530 = vpow.pop %v529
  %v531 = vmul.f32 %v528, 1.442695
  %v532 = vpow.pop %v531
  %v533 = vsel %vm51, %v530, 0.0
  %534 = vadd.xlane.f32.xlu0 %v533
  %v535 = vpop.xlane.xlu0 %534
  %v536 = vsel %vm51, %v532, 0.0
  %537 = vadd.xlane.f32.xlu0 %v536
  %v538 = vpop.xlane.xlu0 %537
  %v539 = vrcp.pop %v535
  %v540 = vmul.f32 %v530, %v539
  %v541 = vrcp.pop %v538
  %v542 = vmul.f32 %v532, %v541
  %v543 = vpack.c.bf16 %v542, %v540
  %544 = vrot.lane.b32.xlu0 %v466, 64
  %v545 = vpop.permute.xlu0 %544
  %v548 = vsel %vm51, %v543, 0
  %550 = vmatprep.subr.bf16.mxu0 0
  %551 = vmatpush1.bf16.msra.mxu0 %v545
  %552 = vmatprep.subr.bf16.mxu0 0
  %553 = vmatpush1.bf16.msra.mxu0 0
  %554 = vmatprep.subr.bf16.mxu0 0
  %555 = vmatpush1.bf16.msra.mxu0 0
  %556 = vmatprep.subr.bf16.mxu0 0
  %557 = vmatpush1.bf16.msra.mxu0 0
  %558 = vmatprep.subr.bf16.mxu0 0
  %559 = vmatpush1.bf16.msra.mxu0 0
  %560 = vmatprep.subr.bf16.mxu0 0
  %561 = vmatpush1.bf16.msra.mxu0 0
  %562 = vmatprep.subr.bf16.mxu0 0
  %563 = vmatpush1.bf16.msra.mxu0 0
  %564 = vmatprep.subr.bf16.mxu0 0
  %565 = vmatpush1.bf16.msra.mxu0 0
  %566 = vmatprep.subr.bf16.mxu0 0
  %567 = vmatpush1.bf16.msra.mxu0 0
  %568 = vmatprep.subr.bf16.mxu0 0
  %569 = vmatpush1.bf16.msra.mxu0 0
  %570 = vmatprep.subr.bf16.mxu0 0
  %571 = vmatpush1.bf16.msra.mxu0 0
  %572 = vmatprep.subr.bf16.mxu0 0
  %573 = vmatpush1.bf16.msra.mxu0 0
  %574 = vmatprep.subr.bf16.mxu0 0
  %575 = vmatpush1.bf16.msra.mxu0 0
  %576 = vmatprep.subr.bf16.mxu0 0
  %577 = vmatpush1.bf16.msra.mxu0 0
  %578 = vmatprep.subr.bf16.mxu0 0
  %579 = vmatpush1.bf16.msra.mxu0 0
  %580 = vmatprep.subr.bf16.mxu0 0
  %581 = vmatpush1.bf16.msra.mxu0 0
  %582 = vmatprep.mubr.bf16.mxu0 0
  %583 = vmatmul.mubr.bf16.gmra.mrb[0].mxu0 %v548
  %v584 = vpop.f32.mrb[0].mxu0
  %v585 = vadd.f32 0.0, %v584
  %v586 = vpop.f32.mrb[0].mxu0
  %v587 = vpop.f32.mrb[0].mxu0
  %v588 = vadd.f32 0.0, %v587
  %v589 = vpop.f32.mrb[0].mxu0
  %590 = vdwg.mxu0
  %591 = vrot.lane.b32.xlu0 %v466, 112
  %v592 = vpop.permute.xlu0 %591
  %593 = vrot.lane.b32.xlu0 %v466, 80
  %v594 = vpop.permute.xlu0 %593
  %v596 = vsel %vm51, %v592, 0
  %v599 = vsel %vm51, %v594, 0
  %601 = vmatprep.subr.bf16.mxu0 0
  %602 = vmatpush1.bf16.xpose.msra.mxu0 %v599
  %603 = vmatprep.subr.bf16.mxu0 0
  %604 = vmatpush1.bf16.xpose.msra.mxu0 0
  %605 = vmatprep.subr.bf16.mxu0 0
  %606 = vmatpush1.bf16.xpose.msra.mxu0 0
  %607 = vmatprep.subr.bf16.mxu0 0
  %608 = vmatpush1.bf16.xpose.msra.mxu0 0
  %609 = vmatprep.subr.bf16.mxu0 0
  %610 = vmatpush1.bf16.xpose.msra.mxu0 0
  %611 = vmatprep.subr.bf16.mxu0 0
  %612 = vmatpush1.bf16.xpose.msra.mxu0 0
  %613 = vmatprep.subr.bf16.mxu0 0
  %614 = vmatpush1.bf16.xpose.msra.mxu0 0
  %615 = vmatprep.subr.bf16.mxu0 0
  %616 = vmatpush1.bf16.xpose.msra.mxu0 0
  %617 = vmatprep.subr.bf16.mxu0 0
  %618 = vmatpush1.bf16.xpose.msra.mxu0 0
  %619 = vmatprep.subr.bf16.mxu0 0
  %620 = vmatpush1.bf16.xpose.msra.mxu0 0
  %621 = vmatprep.subr.bf16.mxu0 0
  %622 = vmatpush1.bf16.xpose.msra.mxu0 0
  %623 = vmatprep.subr.bf16.mxu0 0
  %624 = vmatpush1.bf16.xpose.msra.mxu0 0
  %625 = vmatprep.subr.bf16.mxu0 0
  %626 = vmatpush1.bf16.xpose.msra.mxu0 0
  %627 = vmatprep.subr.bf16.mxu0 0
  %628 = vmatpush1.bf16.xpose.msra.mxu0 0
  %629 = vmatprep.subr.bf16.mxu0 0
  %630 = vmatpush1.bf16.xpose.msra.mxu0 0
  %631 = vmatprep.subr.bf16.mxu0 0
  %632 = vmatpush1.bf16.xpose.msra.mxu0 0
  %633 = vmatprep.mubr.bf16.mxu0 0
  %634 = vmatmul.mubr.bf16.gmra.mrb[0].mxu0 %v596
  %v635 = vpop.f32.mrb[0].mxu0
  %v636 = vadd.f32 0.0, %v635
  %v637 = vpop.f32.mrb[0].mxu0
  %v638 = vpop.f32.mrb[0].mxu0
  %v639 = vadd.f32 0.0, %v638
  %v640 = vpop.f32.mrb[0].mxu0
  %641 = vdwg.mxu0
  %v642 = vmul.f32 %v636, 0.25
  %v643 = vmul.f32 %v639, 0.25
  %v644 = vadd.f32 %v642, %v30
  %v645 = vadd.f32 %v643, %v31
  %v646 = vsel %vm51, %v644, -inf
  %647 = vmax.xlane.f32.xlu0 %v646
  %v648 = vpop.xlane.xlu0 %647
  %v649 = vsel %vm51, %v645, -inf
  %650 = vmax.xlane.f32.xlu0 %v649
  %v651 = vpop.xlane.xlu0 %650
  %v652 = vsub.f32 %v644, %v648
  %v653 = vsub.f32 %v645, %v651
  %v654 = vmul.f32 %v652, 1.442695
  %v655 = vpow.pop %v654
  %v656 = vmul.f32 %v653, 1.442695
  %v657 = vpow.pop %v656
  %v658 = vsel %vm51, %v655, 0.0
  %659 = vadd.xlane.f32.xlu0 %v658
  %v660 = vpop.xlane.xlu0 %659
  %v661 = vsel %vm51, %v657, 0.0
  %662 = vadd.xlane.f32.xlu0 %v661
  %v663 = vpop.xlane.xlu0 %662
  %v664 = vrcp.pop %v660
  %v665 = vmul.f32 %v655, %v664
  %v666 = vrcp.pop %v663
  %v667 = vmul.f32 %v657, %v666
  %v668 = vpack.c.bf16 %v667, %v665
  %669 = vrot.lane.b32.xlu0 %v466, 48
  %v670 = vpop.permute.xlu0 %669
  %v673 = vsel %vm51, %v668, 0
  %675 = vmatprep.subr.bf16.mxu0 0
  %676 = vmatpush1.bf16.msra.mxu0 %v670
  %677 = vmatprep.subr.bf16.mxu0 0
  %678 = vmatpush1.bf16.msra.mxu0 0
  %679 = vmatprep.subr.bf16.mxu0 0
  %680 = vmatpush1.bf16.msra.mxu0 0
  %681 = vmatprep.subr.bf16.mxu0 0
  %682 = vmatpush1.bf16.msra.mxu0 0
  %683 = vmatprep.subr.bf16.mxu0 0
  %684 = vmatpush1.bf16.msra.mxu0 0
  %685 = vmatprep.subr.bf16.mxu0 0
  %686 = vmatpush1.bf16.msra.mxu0 0
  %687 = vmatprep.subr.bf16.mxu0 0
  %688 = vmatpush1.bf16.msra.mxu0 0
  %689 = vmatprep.subr.bf16.mxu0 0
  %690 = vmatpush1.bf16.msra.mxu0 0
  %691 = vmatprep.subr.bf16.mxu0 0
  %692 = vmatpush1.bf16.msra.mxu0 0
  %693 = vmatprep.subr.bf16.mxu0 0
  %694 = vmatpush1.bf16.msra.mxu0 0
  %695 = vmatprep.subr.bf16.mxu0 0
  %696 = vmatpush1.bf16.msra.mxu0 0
  %697 = vmatprep.subr.bf16.mxu0 0
  %698 = vmatpush1.bf16.msra.mxu0 0
  %699 = vmatprep.subr.bf16.mxu0 0
  %700 = vmatpush1.bf16.msra.mxu0 0
  %701 = vmatprep.subr.bf16.mxu0 0
  %702 = vmatpush1.bf16.msra.mxu0 0
  %703 = vmatprep.subr.bf16.mxu0 0
  %704 = vmatpush1.bf16.msra.mxu0 0
  %705 = vmatprep.subr.bf16.mxu0 0
  %706 = vmatpush1.bf16.msra.mxu0 0
  %707 = vmatprep.mubr.bf16.mxu0 0
  %708 = vmatmul.mubr.bf16.gmra.mrb[0].mxu0 %v673
  %v709 = vpop.f32.mrb[0].mxu0
  %v710 = vadd.f32 0.0, %v709
  %v711 = vpop.f32.mrb[0].mxu0
  %v712 = vpop.f32.mrb[0].mxu0
  %v713 = vadd.f32 0.0, %v712
  %v714 = vpop.f32.mrb[0].mxu0
  %715 = vdwg.mxu0
  %718 = vrot.lane.b32.xlu0 %v710, 16
  %v719 = vpop.permute.xlu0 %718
  %720 = vrot.lane.b32.xlu0 %v713, 16
  %v721 = vpop.permute.xlu0 %720
  %v724 = vsel %vm51, %v585, %v719
  %v725 = vsel %vm51, %v588, %v721
  %v726 = vpack.c.bf16 %v725, %v724
  %v727 = vlaneseq
  %v728 = vshrl.u32 %v727, 7
  %v729 = vsub.s32 1, %v728
  %v730 = vrot.slane %v404, %v729
  %731 = vrot.lane.b32.xlu0 %v418, 32
  %v732 = vpop.permute.xlu0 %731
  %733 = vrot.lane.b32.xlu0 %v419, 32
  %v734 = vpop.permute.xlu0 %733
  %v738 = vsel %vm124, %v726, 0
  %740 = vmatprep.subr.bf16.mxu0 0
  %741 = vmatpush1.bf16.msra.mxu0 %v732
  %742 = vmatprep.subr.bf16.mxu0 0
  %743 = vmatpush1.bf16.msra.mxu0 %v734
  %744 = vmatprep.subr.bf16.mxu0 0
  %745 = vmatpush1.bf16.msra.mxu0 0
  %746 = vmatprep.subr.bf16.mxu0 0
  %747 = vmatpush1.bf16.msra.mxu0 0
  %748 = vmatprep.subr.bf16.mxu0 0
  %749 = vmatpush1.bf16.msra.mxu0 0
  %750 = vmatprep.subr.bf16.mxu0 0
  %751 = vmatpush1.bf16.msra.mxu0 0
  %752 = vmatprep.subr.bf16.mxu0 0
  %753 = vmatpush1.bf16.msra.mxu0 0
  %754 = vmatprep.subr.bf16.mxu0 0
  %755 = vmatpush1.bf16.msra.mxu0 0
  %756 = vmatprep.subr.bf16.mxu0 0
  %757 = vmatpush1.bf16.msra.mxu0 0
  %758 = vmatprep.subr.bf16.mxu0 0
  %759 = vmatpush1.bf16.msra.mxu0 0
  %760 = vmatprep.subr.bf16.mxu0 0
  %761 = vmatpush1.bf16.msra.mxu0 0
  %762 = vmatprep.subr.bf16.mxu0 0
  %763 = vmatpush1.bf16.msra.mxu0 0
  %764 = vmatprep.subr.bf16.mxu0 0
  %765 = vmatpush1.bf16.msra.mxu0 0
  %766 = vmatprep.subr.bf16.mxu0 0
  %767 = vmatpush1.bf16.msra.mxu0 0
  %768 = vmatprep.subr.bf16.mxu0 0
  %769 = vmatpush1.bf16.msra.mxu0 0
  %770 = vmatprep.subr.bf16.mxu0 0
  %771 = vmatpush1.bf16.msra.mxu0 0
  %772 = vmatprep.mubr.bf16.mxu0 0
  %773 = vmatmul.mubr.bf16.gmra.mrb[0].mxu0 %v738
  %v774 = vpop.f32.mrb[0].mxu0
  %v775 = vadd.f32 %v730, %v774
  %v776 = vpop.f32.mrb[0].mxu0
  %v777 = vpop.f32.mrb[0].mxu0
  %v778 = vadd.f32 %v730, %v777
  %v779 = vpop.f32.mrb[0].mxu0
  %780 = vdwg.mxu0
  %v781 = vadd.f32 %v775, %v398
  %v782 = vadd.f32 %v778, %v399
  %v783 = vsel %vm124, %v781, 0.0
  %784 = vadd.xlane.f32.xlu0 %v783
  %v785 = vpop.xlane.xlu0 %784
  %v786 = vsel %vm124, %v782, 0.0
  %787 = vadd.xlane.f32.xlu0 %v786
  %v788 = vpop.xlane.xlu0 %787
  %v789 = vmul.f32 %v785, %v367
  %v790 = vmul.f32 %v788, %v367
  %v791 = vsub.f32 %v781, %v789
  %v792 = vsub.f32 %v782, %v790
  %v793 = vmul.f32 %v791, %v791
  %v794 = vmul.f32 %v792, %v792
  %v795 = vsel %vm124, %v793, 0.0
  %796 = vadd.xlane.f32.xlu0 %v795
  %v797 = vpop.xlane.xlu0 %796
  %v798 = vsel %vm124, %v794, 0.0
  %799 = vadd.xlane.f32.xlu0 %v798
  %v800 = vpop.xlane.xlu0 %799
  %v801 = vmul.f32 %v797, %v367
  %v802 = vmul.f32 %v800, %v367
  %v803 = vadd.f32 %v801, 1e-12
  %v804 = vadd.f32 %v802, 1e-12
  %v805 = vrsqrt.pop %v803
  %v806 = vrsqrt.pop %v804
  %v807 = vmul.f32 %v791, %v805
  %v808 = vmul.f32 %v792, %v806
  %v809 = vlaneseq
  %v810 = vshrl.u32 %v809, 7
  %v811 = vsub.s32 2, %v810
  %v812 = vrot.slane %v404, %v811
  %v813 = vmul.f32 %v807, %v812
  %v814 = vmul.f32 %v808, %v812
  %v815 = vlaneseq
  %v816 = vshrl.u32 %v815, 7
  %v817 = vsub.s32 3, %v816
  %v818 = vrot.slane %v404, %v817
  %v819 = vadd.f32 %v813, %v818
  %v820 = vadd.f32 %v814, %v818
  %v821 = vpack.c.bf16 %v820, %v819
  %v822 = vlaneseq
  %v823 = vshrl.u32 %v822, 7
  %v824 = vsub.s32 4, %v823
  %v825 = vrot.slane %v404, %v824
  %v826 = vunpack.c.h.b16 %v400
  %v827 = vunpack.c.h.b16 %v401
  %v828 = vunpack.c.h.b16 %v402
  %v829 = vunpack.c.h.b16 %v403
  %v830 = vpack.c.b16 %v827, %v826
  %v831 = vpack.c.b16 %v829, %v828
  %v835 = vsel %vm124, %v821, 0
  %837 = vmatprep.subr.bf16.mxu0 0
  %838 = vmatpush1.bf16.msra.mxu0 %v830
  %839 = vmatprep.subr.bf16.mxu0 0
  %840 = vmatpush1.bf16.msra.mxu0 %v831
  %841 = vmatprep.subr.bf16.mxu0 0
  %842 = vmatpush1.bf16.msra.mxu0 0
  %843 = vmatprep.subr.bf16.mxu0 0
  %844 = vmatpush1.bf16.msra.mxu0 0
  %845 = vmatprep.subr.bf16.mxu0 0
  %846 = vmatpush1.bf16.msra.mxu0 0
  %847 = vmatprep.subr.bf16.mxu0 0
  %848 = vmatpush1.bf16.msra.mxu0 0
  %849 = vmatprep.subr.bf16.mxu0 0
  %850 = vmatpush1.bf16.msra.mxu0 0
  %851 = vmatprep.subr.bf16.mxu0 0
  %852 = vmatpush1.bf16.msra.mxu0 0
  %853 = vmatprep.subr.bf16.mxu0 0
  %854 = vmatpush1.bf16.msra.mxu0 0
  %855 = vmatprep.subr.bf16.mxu0 0
  %856 = vmatpush1.bf16.msra.mxu0 0
  %857 = vmatprep.subr.bf16.mxu0 0
  %858 = vmatpush1.bf16.msra.mxu0 0
  %859 = vmatprep.subr.bf16.mxu0 0
  %860 = vmatpush1.bf16.msra.mxu0 0
  %861 = vmatprep.subr.bf16.mxu0 0
  %862 = vmatpush1.bf16.msra.mxu0 0
  %863 = vmatprep.subr.bf16.mxu0 0
  %864 = vmatpush1.bf16.msra.mxu0 0
  %865 = vmatprep.subr.bf16.mxu0 0
  %866 = vmatpush1.bf16.msra.mxu0 0
  %867 = vmatprep.subr.bf16.mxu0 0
  %868 = vmatpush1.bf16.msra.mxu0 0
  %869 = vmatprep.mubr.bf16.mxu0 0
  %870 = vmatmul.mubr.bf16.gmra.mrb[0].mxu0 %v835
  %v871 = vpop.f32.mrb[0].mxu0
  %v872 = vadd.f32 %v825, %v871
  %v873 = vpop.f32.mrb[0].mxu0
  %v874 = vpop.f32.mrb[0].mxu0
  %v875 = vadd.f32 %v825, %v874
  %v876 = vpop.f32.mrb[0].mxu0
  %877 = vdwg.mxu0
  %v878 = vmul.f32 %v872, 0.5
  %v879 = vmul.f32 %v875, 0.5
  %v880 = vmul.f32 %v872, 0.044715
  %v881 = vmul.f32 %v875, 0.044715
  %v882 = vmul.f32 %v880, %v872
  %v883 = vmul.f32 %v881, %v875
  %v884 = vmul.f32 %v882, %v872
  %v885 = vmul.f32 %v883, %v875
  %v886 = vadd.f32 %v872, %v884
  %v887 = vadd.f32 %v875, %v885
  %v888 = vmul.f32 %v886, 0.7978846
  %v889 = vmul.f32 %v887, 0.7978846
  %v890 = vtanh.pop %v888
  %v891 = vtanh.pop %v889
  %v892 = vadd.f32 %v890, 1.0
  %v893 = vadd.f32 %v891, 1.0
  %v894 = vmul.f32 %v878, %v892
  %v895 = vmul.f32 %v879, %v893
  %v896 = vpack.c.bf16 %v895, %v894
  %v897 = vld [vmem:[%s6] sm:$0xf]
  %v898 = vld [vmem:[%s6 + $0x4] sm:$0xf]
  %v899 = vld [vmem:[%s6 + $0x8] sm:$0xf]
  %v900 = vld [vmem:[%s6 + $0xc] sm:$0xf]
  %v901 = vld [vmem:[%s6 + $0x10] sm:$0xf]
  %v902 = vld [vmem:[%s6 + $0x14] sm:$0xf]
  %v903 = vld [vmem:[%s6 + $0x18] sm:$0xf]
  %v904 = vld [vmem:[%s6 + $0x1c] sm:$0xf]
  %v905 = vlaneseq
  %v906 = vshrl.u32 %v905, 7
  %v907 = vsub.s32 5, %v906
  %v908 = vrot.slane %v404, %v907
  %v917 = vunpack.c.l.b16 %v897
  %v918 = vunpack.c.l.b16 %v898
  %v919 = vunpack.c.l.b16 %v899
  %v920 = vunpack.c.l.b16 %v900
  %v921 = vunpack.c.l.b16 %v901
  %v922 = vunpack.c.l.b16 %v902
  %v923 = vunpack.c.l.b16 %v903
  %v924 = vunpack.c.l.b16 %v904
  %v925 = vpack.c.b16 %v918, %v917
  %v926 = vpack.c.b16 %v920, %v919
  %v927 = vpack.c.b16 %v922, %v921
  %v928 = vpack.c.b16 %v924, %v923
  %vm933 = vcmask 523264
  %v935 = vsel %vm933, %v896, 0
  %937 = vmatprep.subr.bf16.mxu0 0
  %938 = vmatpush1.bf16.msra.mxu0 %v925
  %939 = vmatprep.subr.bf16.mxu0 0
  %940 = vmatpush1.bf16.msra.mxu0 %v926
  %941 = vmatprep.subr.bf16.mxu0 0
  %942 = vmatpush1.bf16.msra.mxu0 %v927
  %943 = vmatprep.subr.bf16.mxu0 0
  %944 = vmatpush1.bf16.msra.mxu0 %v928
  %945 = vmatprep.subr.bf16.mxu0 0
  %946 = vmatpush1.bf16.msra.mxu0 0
  %947 = vmatprep.subr.bf16.mxu0 0
  %948 = vmatpush1.bf16.msra.mxu0 0
  %949 = vmatprep.subr.bf16.mxu0 0
  %950 = vmatpush1.bf16.msra.mxu0 0
  %951 = vmatprep.subr.bf16.mxu0 0
  %952 = vmatpush1.bf16.msra.mxu0 0
  %953 = vmatprep.subr.bf16.mxu0 0
  %954 = vmatpush1.bf16.msra.mxu0 0
  %955 = vmatprep.subr.bf16.mxu0 0
  %956 = vmatpush1.bf16.msra.mxu0 0
  %957 = vmatprep.subr.bf16.mxu0 0
  %958 = vmatpush1.bf16.msra.mxu0 0
  %959 = vmatprep.subr.bf16.mxu0 0
  %960 = vmatpush1.bf16.msra.mxu0 0
  %961 = vmatprep.subr.bf16.mxu0 0
  %962 = vmatpush1.bf16.msra.mxu0 0
  %963 = vmatprep.subr.bf16.mxu0 0
  %964 = vmatpush1.bf16.msra.mxu0 0
  %965 = vmatprep.subr.bf16.mxu0 0
  %966 = vmatpush1.bf16.msra.mxu0 0
  %967 = vmatprep.subr.bf16.mxu0 0
  %968 = vmatpush1.bf16.msra.mxu0 0
  %969 = vmatprep.mubr.bf16.mxu0 0
  %970 = vmatmul.mubr.bf16.gmra.mrb[0].mxu0 %v935
  %v971 = vpop.f32.mrb[0].mxu0
  %v972 = vadd.f32 %v908, %v971
  %v973 = vpop.f32.mrb[0].mxu0
  %v974 = vpop.f32.mrb[0].mxu0
  %v975 = vadd.f32 %v908, %v974
  %v976 = vpop.f32.mrb[0].mxu0
  %977 = vdwg.mxu0
  %v978 = vadd.f32 %v972, %v819
  %v979 = vadd.f32 %v975, %v820
  %v980 = vsel %vm124, %v978, 0.0
  %981 = vadd.xlane.f32.xlu0 %v980
  %v982 = vpop.xlane.xlu0 %981
  %v983 = vsel %vm124, %v979, 0.0
  %984 = vadd.xlane.f32.xlu0 %v983
  %v985 = vpop.xlane.xlu0 %984
  %v986 = vmul.f32 %v982, %v367
  %v987 = vmul.f32 %v985, %v367
  %v988 = vsub.f32 %v978, %v986
  %v989 = vsub.f32 %v979, %v987
  %v990 = vmul.f32 %v988, %v988
  %v991 = vmul.f32 %v989, %v989
  %v992 = vsel %vm124, %v990, 0.0
  %993 = vadd.xlane.f32.xlu0 %v992
  %v994 = vpop.xlane.xlu0 %993
  %v995 = vsel %vm124, %v991, 0.0
  %996 = vadd.xlane.f32.xlu0 %v995
  %v997 = vpop.xlane.xlu0 %996
  %v998 = vmul.f32 %v994, %v367
  %v999 = vmul.f32 %v997, %v367
  %v1000 = vadd.f32 %v998, 1e-12
  %v1001 = vadd.f32 %v999, 1e-12
  %v1002 = vrsqrt.pop %v1000
  %v1003 = vrsqrt.pop %v1001
  %v1004 = vmul.f32 %v988, %v1002
  %v1005 = vmul.f32 %v989, %v1003
  %v1006 = vlaneseq
  %v1007 = vshrl.u32 %v1006, 7
  %v1008 = vsub.s32 6, %v1007
  %v1009 = vrot.slane %v404, %v1008
  %v1010 = vmul.f32 %v1004, %v1009
  %v1011 = vmul.f32 %v1005, %v1009
  %v1012 = vlaneseq
  %v1013 = vshrl.u32 %v1012, 7
  %v1014 = vsub.s32 7, %v1013
  %v1015 = vrot.slane %v404, %v1014
  %v1016 = vadd.f32 %v1010, %v1015
  %v1017 = vadd.f32 %v1011, %v1015
  %s1018 = scalar_lea.vmem %s5, 32
  %v1019 = vld [vmem:[%s1018] sm:$0xff]
  %v1020 = vld [vmem:[%s1018 + $0x8] sm:$0xff]
  %v1021 = vld [vmem:[%s1018 + $0x10] sm:$0xff]
  %v1022 = vld [vmem:[%s1018 + $0x18] sm:$0xff]
  %s1023 = scalar_lea.vmem %s7, 8
  %v1024 = vld [vmem:[%s1023] sm:$0xff]
  %v1025 = vpack.c.bf16 %v1017, %v1016
  %v1026 = vlaneseq
  %v1027 = vshrl.u32 %v1026, 7
  %v1028 = vsub.s32 0, %v1027
  %v1029 = vrot.slane %v1024, %v1028
  %v1034 = vunpack.c.l.b16 %v1019
  %v1035 = vunpack.c.l.b16 %v1020
  %v1036 = vunpack.c.l.b16 %v1021
  %v1037 = vunpack.c.l.b16 %v1022
  %v1038 = vpack.c.b16 %v1035, %v1034
  %v1039 = vpack.c.b16 %v1037, %v1036
  %v1043 = vsel %vm124, %v1025, 0
  %1045 = vmatprep.subr.bf16.mxu0 0
  %1046 = vmatpush1.bf16.msra.mxu0 %v1038
  %1047 = vmatprep.subr.bf16.mxu0 0
  %1048 = vmatpush1.bf16.msra.mxu0 %v1039
  %1049 = vmatprep.subr.bf16.mxu0 0
  %1050 = vmatpush1.bf16.msra.mxu0 0
  %1051 = vmatprep.subr.bf16.mxu0 0
  %1052 = vmatpush1.bf16.msra.mxu0 0
  %1053 = vmatprep.subr.bf16.mxu0 0
  %1054 = vmatpush1.bf16.msra.mxu0 0
  %1055 = vmatprep.subr.bf16.mxu0 0
  %1056 = vmatpush1.bf16.msra.mxu0 0
  %1057 = vmatprep.subr.bf16.mxu0 0
  %1058 = vmatpush1.bf16.msra.mxu0 0
  %1059 = vmatprep.subr.bf16.mxu0 0
  %1060 = vmatpush1.bf16.msra.mxu0 0
  %1061 = vmatprep.subr.bf16.mxu0 0
  %1062 = vmatpush1.bf16.msra.mxu0 0
  %1063 = vmatprep.subr.bf16.mxu0 0
  %1064 = vmatpush1.bf16.msra.mxu0 0
  %1065 = vmatprep.subr.bf16.mxu0 0
  %1066 = vmatpush1.bf16.msra.mxu0 0
  %1067 = vmatprep.subr.bf16.mxu0 0
  %1068 = vmatpush1.bf16.msra.mxu0 0
  %1069 = vmatprep.subr.bf16.mxu0 0
  %1070 = vmatpush1.bf16.msra.mxu0 0
  %1071 = vmatprep.subr.bf16.mxu0 0
  %1072 = vmatpush1.bf16.msra.mxu0 0
  %1073 = vmatprep.subr.bf16.mxu0 0
  %1074 = vmatpush1.bf16.msra.mxu0 0
  %1075 = vmatprep.subr.bf16.mxu0 0
  %1076 = vmatpush1.bf16.msra.mxu0 0
  %1077 = vmatprep.mubr.bf16.mxu0 0
  %1078 = vmatmul.mubr.bf16.gmra.mrb[0].mxu0 %v1043
  %v1079 = vpop.f32.mrb[0].mxu0
  %v1080 = vadd.f32 %v1029, %v1079
  %v1081 = vpop.f32.mrb[0].mxu0
  %v1082 = vpop.f32.mrb[0].mxu0
  %v1083 = vadd.f32 %v1029, %v1082
  %v1084 = vpop.f32.mrb[0].mxu0
  %1085 = vdwg.mxu0
  %v1086 = vpack.c.bf16 %v1083, %v1080
  %1088 = vrot.lane.b32.xlu0 %v1086, 96
  %v1089 = vpop.permute.xlu0 %1088
  %v1091 = vsel %vm51, %v1086, 0
  %v1094 = vsel %vm51, %v1089, 0
  %1096 = vmatprep.subr.bf16.mxu0 0
  %1097 = vmatpush1.bf16.xpose.msra.mxu0 %v1094
  %1098 = vmatprep.subr.bf16.mxu0 0
  %1099 = vmatpush1.bf16.xpose.msra.mxu0 0
  %1100 = vmatprep.subr.bf16.mxu0 0
  %1101 = vmatpush1.bf16.xpose.msra.mxu0 0
  %1102 = vmatprep.subr.bf16.mxu0 0
  %1103 = vmatpush1.bf16.xpose.msra.mxu0 0
  %1104 = vmatprep.subr.bf16.mxu0 0
  %1105 = vmatpush1.bf16.xpose.msra.mxu0 0
  %1106 = vmatprep.subr.bf16.mxu0 0
  %1107 = vmatpush1.bf16.xpose.msra.mxu0 0
  %1108 = vmatprep.subr.bf16.mxu0 0
  %1109 = vmatpush1.bf16.xpose.msra.mxu0 0
  %1110 = vmatprep.subr.bf16.mxu0 0
  %1111 = vmatpush1.bf16.xpose.msra.mxu0 0
  %1112 = vmatprep.subr.bf16.mxu0 0
  %1113 = vmatpush1.bf16.xpose.msra.mxu0 0
  %1114 = vmatprep.subr.bf16.mxu0 0
  %1115 = vmatpush1.bf16.xpose.msra.mxu0 0
  %1116 = vmatprep.subr.bf16.mxu0 0
  %1117 = vmatpush1.bf16.xpose.msra.mxu0 0
  %1118 = vmatprep.subr.bf16.mxu0 0
  %1119 = vmatpush1.bf16.xpose.msra.mxu0 0
  %1120 = vmatprep.subr.bf16.mxu0 0
  %1121 = vmatpush1.bf16.xpose.msra.mxu0 0
  %1122 = vmatprep.subr.bf16.mxu0 0
  %1123 = vmatpush1.bf16.xpose.msra.mxu0 0
  %1124 = vmatprep.subr.bf16.mxu0 0
  %1125 = vmatpush1.bf16.xpose.msra.mxu0 0
  %1126 = vmatprep.subr.bf16.mxu0 0
  %1127 = vmatpush1.bf16.xpose.msra.mxu0 0
  %1128 = vmatprep.mubr.bf16.mxu0 0
  %1129 = vmatmul.mubr.bf16.gmra.mrb[0].mxu0 %v1091
  %v1130 = vpop.f32.mrb[0].mxu0
  %v1131 = vadd.f32 0.0, %v1130
  %v1132 = vpop.f32.mrb[0].mxu0
  %v1133 = vpop.f32.mrb[0].mxu0
  %v1134 = vadd.f32 0.0, %v1133
  %v1135 = vpop.f32.mrb[0].mxu0
  %1136 = vdwg.mxu0
  %v1137 = vmul.f32 %v1131, 0.25
  %v1138 = vmul.f32 %v1134, 0.25
  %v1139 = vadd.f32 %v1137, %v30
  %v1140 = vadd.f32 %v1138, %v31
  %v1141 = vsel %vm51, %v1139, -inf
  %1142 = vmax.xlane.f32.xlu0 %v1141
  %v1143 = vpop.xlane.xlu0 %1142
  %v1144 = vsel %vm51, %v1140, -inf
  %1145 = vmax.xlane.f32.xlu0 %v1144
  %v1146 = vpop.xlane.xlu0 %1145
  %v1147 = vsub.f32 %v1139, %v1143
  %v1148 = vsub.f32 %v1140, %v1146
  %v1149 = vmul.f32 %v1147, 1.442695
  %v1150 = vpow.pop %v1149
  %v1151 = vmul.f32 %v1148, 1.442695
  %v1152 = vpow.pop %v1151
  %v1153 = vsel %vm51, %v1150, 0.0
  %1154 = vadd.xlane.f32.xlu0 %v1153
  %v1155 = vpop.xlane.xlu0 %1154
  %v1156 = vsel %vm51, %v1152, 0.0
  %1157 = vadd.xlane.f32.xlu0 %v1156
  %v1158 = vpop.xlane.xlu0 %1157
  %v1159 = vrcp.pop %v1155
  %v1160 = vmul.f32 %v1150, %v1159
  %v1161 = vrcp.pop %v1158
  %v1162 = vmul.f32 %v1152, %v1161
  %v1163 = vpack.c.bf16 %v1162, %v1160
  %1164 = vrot.lane.b32.xlu0 %v1086, 64
  %v1165 = vpop.permute.xlu0 %1164
  %v1168 = vsel %vm51, %v1163, 0
  %1170 = vmatprep.subr.bf16.mxu0 0
  %1171 = vmatpush1.bf16.msra.mxu0 %v1165
  %1172 = vmatprep.subr.bf16.mxu0 0
  %1173 = vmatpush1.bf16.msra.mxu0 0
  %1174 = vmatprep.subr.bf16.mxu0 0
  %1175 = vmatpush1.bf16.msra.mxu0 0
  %1176 = vmatprep.subr.bf16.mxu0 0
  %1177 = vmatpush1.bf16.msra.mxu0 0
  %1178 = vmatprep.subr.bf16.mxu0 0
  %1179 = vmatpush1.bf16.msra.mxu0 0
  %1180 = vmatprep.subr.bf16.mxu0 0
  %1181 = vmatpush1.bf16.msra.mxu0 0
  %1182 = vmatprep.subr.bf16.mxu0 0
  %1183 = vmatpush1.bf16.msra.mxu0 0
  %1184 = vmatprep.subr.bf16.mxu0 0
  %1185 = vmatpush1.bf16.msra.mxu0 0
  %1186 = vmatprep.subr.bf16.mxu0 0
  %1187 = vmatpush1.bf16.msra.mxu0 0
  %1188 = vmatprep.subr.bf16.mxu0 0
  %1189 = vmatpush1.bf16.msra.mxu0 0
  %1190 = vmatprep.subr.bf16.mxu0 0
  %1191 = vmatpush1.bf16.msra.mxu0 0
  %1192 = vmatprep.subr.bf16.mxu0 0
  %1193 = vmatpush1.bf16.msra.mxu0 0
  %1194 = vmatprep.subr.bf16.mxu0 0
  %1195 = vmatpush1.bf16.msra.mxu0 0
  %1196 = vmatprep.subr.bf16.mxu0 0
  %1197 = vmatpush1.bf16.msra.mxu0 0
  %1198 = vmatprep.subr.bf16.mxu0 0
  %1199 = vmatpush1.bf16.msra.mxu0 0
  %1200 = vmatprep.subr.bf16.mxu0 0
  %1201 = vmatpush1.bf16.msra.mxu0 0
  %1202 = vmatprep.mubr.bf16.mxu0 0
  %1203 = vmatmul.mubr.bf16.gmra.mrb[0].mxu0 %v1168
  %v1204 = vpop.f32.mrb[0].mxu0
  %v1205 = vadd.f32 0.0, %v1204
  %v1206 = vpop.f32.mrb[0].mxu0
  %v1207 = vpop.f32.mrb[0].mxu0
  %v1208 = vadd.f32 0.0, %v1207
  %v1209 = vpop.f32.mrb[0].mxu0
  %1210 = vdwg.mxu0
  %1211 = vrot.lane.b32.xlu0 %v1086, 112
  %v1212 = vpop.permute.xlu0 %1211
  %1213 = vrot.lane.b32.xlu0 %v1086, 80
  %v1214 = vpop.permute.xlu0 %1213
  %v1216 = vsel %vm51, %v1212, 0
  %v1219 = vsel %vm51, %v1214, 0
  %1221 = vmatprep.subr.bf16.mxu0 0
  %1222 = vmatpush1.bf16.xpose.msra.mxu0 %v1219
  %1223 = vmatprep.subr.bf16.mxu0 0
  %1224 = vmatpush1.bf16.xpose.msra.mxu0 0
  %1225 = vmatprep.subr.bf16.mxu0 0
  %1226 = vmatpush1.bf16.xpose.msra.mxu0 0
  %1227 = vmatprep.subr.bf16.mxu0 0
  %1228 = vmatpush1.bf16.xpose.msra.mxu0 0
  %1229 = vmatprep.subr.bf16.mxu0 0
  %1230 = vmatpush1.bf16.xpose.msra.mxu0 0
  %1231 = vmatprep.subr.bf16.mxu0 0
  %1232 = vmatpush1.bf16.xpose.msra.mxu0 0
  %1233 = vmatprep.subr.bf16.mxu0 0
  %1234 = vmatpush1.bf16.xpose.msra.mxu0 0
  %1235 = vmatprep.subr.bf16.mxu0 0
  %1236 = vmatpush1.bf16.xpose.msra.mxu0 0
  %1237 = vmatprep.subr.bf16.mxu0 0
  %1238 = vmatpush1.bf16.xpose.msra.mxu0 0
  %1239 = vmatprep.subr.bf16.mxu0 0
  %1240 = vmatpush1.bf16.xpose.msra.mxu0 0
  %1241 = vmatprep.subr.bf16.mxu0 0
  %1242 = vmatpush1.bf16.xpose.msra.mxu0 0
  %1243 = vmatprep.subr.bf16.mxu0 0
  %1244 = vmatpush1.bf16.xpose.msra.mxu0 0
  %1245 = vmatprep.subr.bf16.mxu0 0
  %1246 = vmatpush1.bf16.xpose.msra.mxu0 0
  %1247 = vmatprep.subr.bf16.mxu0 0
  %1248 = vmatpush1.bf16.xpose.msra.mxu0 0
  %1249 = vmatprep.subr.bf16.mxu0 0
  %1250 = vmatpush1.bf16.xpose.msra.mxu0 0
  %1251 = vmatprep.subr.bf16.mxu0 0
  %1252 = vmatpush1.bf16.xpose.msra.mxu0 0
  %1253 = vmatprep.mubr.bf16.mxu0 0
  %1254 = vmatmul.mubr.bf16.gmra.mrb[0].mxu0 %v1216
  %v1255 = vpop.f32.mrb[0].mxu0
  %v1256 = vadd.f32 0.0, %v1255
  %v1257 = vpop.f32.mrb[0].mxu0
  %v1258 = vpop.f32.mrb[0].mxu0
  %v1259 = vadd.f32 0.0, %v1258
  %v1260 = vpop.f32.mrb[0].mxu0
  %1261 = vdwg.mxu0
  %v1262 = vmul.f32 %v1256, 0.25
  %v1263 = vmul.f32 %v1259, 0.25
  %v1264 = vadd.f32 %v1262, %v30
  %v1265 = vadd.f32 %v1263, %v31
  %v1266 = vsel %vm51, %v1264, -inf
  %1267 = vmax.xlane.f32.xlu0 %v1266
  %v1268 = vpop.xlane.xlu0 %1267
  %v1269 = vsel %vm51, %v1265, -inf
  %1270 = vmax.xlane.f32.xlu0 %v1269
  %v1271 = vpop.xlane.xlu0 %1270
  %v1272 = vsub.f32 %v1264, %v1268
  %v1273 = vsub.f32 %v1265, %v1271
  %v1274 = vmul.f32 %v1272, 1.442695
  %v1275 = vpow.pop %v1274
  %v1276 = vmul.f32 %v1273, 1.442695
  %v1277 = vpow.pop %v1276
  %v1278 = vsel %vm51, %v1275, 0.0
  %1279 = vadd.xlane.f32.xlu0 %v1278
  %v1280 = vpop.xlane.xlu0 %1279
  %v1281 = vsel %vm51, %v1277, 0.0
  %1282 = vadd.xlane.f32.xlu0 %v1281
  %v1283 = vpop.xlane.xlu0 %1282
  %v1284 = vrcp.pop %v1280
  %v1285 = vmul.f32 %v1275, %v1284
  %v1286 = vrcp.pop %v1283
  %v1287 = vmul.f32 %v1277, %v1286
  %v1288 = vpack.c.bf16 %v1287, %v1285
  %1289 = vrot.lane.b32.xlu0 %v1086, 48
  %v1290 = vpop.permute.xlu0 %1289
  %v1293 = vsel %vm51, %v1288, 0
  %1295 = vmatprep.subr.bf16.mxu0 0
  %1296 = vmatpush1.bf16.msra.mxu0 %v1290
  %1297 = vmatprep.subr.bf16.mxu0 0
  %1298 = vmatpush1.bf16.msra.mxu0 0
  %1299 = vmatprep.subr.bf16.mxu0 0
  %1300 = vmatpush1.bf16.msra.mxu0 0
  %1301 = vmatprep.subr.bf16.mxu0 0
  %1302 = vmatpush1.bf16.msra.mxu0 0
  %1303 = vmatprep.subr.bf16.mxu0 0
  %1304 = vmatpush1.bf16.msra.mxu0 0
  %1305 = vmatprep.subr.bf16.mxu0 0
  %1306 = vmatpush1.bf16.msra.mxu0 0
  %1307 = vmatprep.subr.bf16.mxu0 0
  %1308 = vmatpush1.bf16.msra.mxu0 0
  %1309 = vmatprep.subr.bf16.mxu0 0
  %1310 = vmatpush1.bf16.msra.mxu0 0
  %1311 = vmatprep.subr.bf16.mxu0 0
  %1312 = vmatpush1.bf16.msra.mxu0 0
  %1313 = vmatprep.subr.bf16.mxu0 0
  %1314 = vmatpush1.bf16.msra.mxu0 0
  %1315 = vmatprep.subr.bf16.mxu0 0
  %1316 = vmatpush1.bf16.msra.mxu0 0
  %1317 = vmatprep.subr.bf16.mxu0 0
  %1318 = vmatpush1.bf16.msra.mxu0 0
  %1319 = vmatprep.subr.bf16.mxu0 0
  %1320 = vmatpush1.bf16.msra.mxu0 0
  %1321 = vmatprep.subr.bf16.mxu0 0
  %1322 = vmatpush1.bf16.msra.mxu0 0
  %1323 = vmatprep.subr.bf16.mxu0 0
  %1324 = vmatpush1.bf16.msra.mxu0 0
  %1325 = vmatprep.subr.bf16.mxu0 0
  %1326 = vmatpush1.bf16.msra.mxu0 0
  %1327 = vmatprep.mubr.bf16.mxu0 0
  %1328 = vmatmul.mubr.bf16.gmra.mrb[0].mxu0 %v1293
  %v1329 = vpop.f32.mrb[0].mxu0
  %v1330 = vadd.f32 0.0, %v1329
  %v1331 = vpop.f32.mrb[0].mxu0
  %v1332 = vpop.f32.mrb[0].mxu0
  %v1333 = vadd.f32 0.0, %v1332
  %v1334 = vpop.f32.mrb[0].mxu0
  %1335 = vdwg.mxu0
  %1338 = vrot.lane.b32.xlu0 %v1330, 16
  %v1339 = vpop.permute.xlu0 %1338
  %1340 = vrot.lane.b32.xlu0 %v1333, 16
  %v1341 = vpop.permute.xlu0 %1340
  %v1344 = vsel %vm51, %v1205, %v1339
  %v1345 = vsel %vm51, %v1208, %v1341
  %v1346 = vpack.c.bf16 %v1345, %v1344
  %v1347 = vlaneseq
  %v1348 = vshrl.u32 %v1347, 7
  %v1349 = vsub.s32 1, %v1348
  %v1350 = vrot.slane %v1024, %v1349
  %1351 = vrot.lane.b32.xlu0 %v1038, 32
  %v1352 = vpop.permute.xlu0 %1351
  %1353 = vrot.lane.b32.xlu0 %v1039, 32
  %v1354 = vpop.permute.xlu0 %1353
  %v1358 = vsel %vm124, %v1346, 0
  %1360 = vmatprep.subr.bf16.mxu0 0
  %1361 = vmatpush1.bf16.msra.mxu0 %v1352
  %1362 = vmatprep.subr.bf16.mxu0 0
  %1363 = vmatpush1.bf16.msra.mxu0 %v1354
  %1364 = vmatprep.subr.bf16.mxu0 0
  %1365 = vmatpush1.bf16.msra.mxu0 0
  %1366 = vmatprep.subr.bf16.mxu0 0
  %1367 = vmatpush1.bf16.msra.mxu0 0
  %1368 = vmatprep.subr.bf16.mxu0 0
  %1369 = vmatpush1.bf16.msra.mxu0 0
  %1370 = vmatprep.subr.bf16.mxu0 0
  %1371 = vmatpush1.bf16.msra.mxu0 0
  %1372 = vmatprep.subr.bf16.mxu0 0
  %1373 = vmatpush1.bf16.msra.mxu0 0
  %1374 = vmatprep.subr.bf16.mxu0 0
  %1375 = vmatpush1.bf16.msra.mxu0 0
  %1376 = vmatprep.subr.bf16.mxu0 0
  %1377 = vmatpush1.bf16.msra.mxu0 0
  %1378 = vmatprep.subr.bf16.mxu0 0
  %1379 = vmatpush1.bf16.msra.mxu0 0
  %1380 = vmatprep.subr.bf16.mxu0 0
  %1381 = vmatpush1.bf16.msra.mxu0 0
  %1382 = vmatprep.subr.bf16.mxu0 0
  %1383 = vmatpush1.bf16.msra.mxu0 0
  %1384 = vmatprep.subr.bf16.mxu0 0
  %1385 = vmatpush1.bf16.msra.mxu0 0
  %1386 = vmatprep.subr.bf16.mxu0 0
  %1387 = vmatpush1.bf16.msra.mxu0 0
  %1388 = vmatprep.subr.bf16.mxu0 0
  %1389 = vmatpush1.bf16.msra.mxu0 0
  %1390 = vmatprep.subr.bf16.mxu0 0
  %1391 = vmatpush1.bf16.msra.mxu0 0
  %1392 = vmatprep.mubr.bf16.mxu0 0
  %1393 = vmatmul.mubr.bf16.gmra.mrb[0].mxu0 %v1358
  %v1394 = vpop.f32.mrb[0].mxu0
  %v1395 = vadd.f32 %v1350, %v1394
  %v1396 = vpop.f32.mrb[0].mxu0
  %v1397 = vpop.f32.mrb[0].mxu0
  %v1398 = vadd.f32 %v1350, %v1397
  %v1399 = vpop.f32.mrb[0].mxu0
  %1400 = vdwg.mxu0
  %v1401 = vadd.f32 %v1395, %v1016
  %v1402 = vadd.f32 %v1398, %v1017
  %v1403 = vsel %vm124, %v1401, 0.0
  %1404 = vadd.xlane.f32.xlu0 %v1403
  %v1405 = vpop.xlane.xlu0 %1404
  %v1406 = vsel %vm124, %v1402, 0.0
  %1407 = vadd.xlane.f32.xlu0 %v1406
  %v1408 = vpop.xlane.xlu0 %1407
  %v1409 = vmul.f32 %v1405, %v367
  %v1410 = vmul.f32 %v1408, %v367
  %v1411 = vsub.f32 %v1401, %v1409
  %v1412 = vsub.f32 %v1402, %v1410
  %v1413 = vmul.f32 %v1411, %v1411
  %v1414 = vmul.f32 %v1412, %v1412
  %v1415 = vsel %vm124, %v1413, 0.0
  %1416 = vadd.xlane.f32.xlu0 %v1415
  %v1417 = vpop.xlane.xlu0 %1416
  %v1418 = vsel %vm124, %v1414, 0.0
  %1419 = vadd.xlane.f32.xlu0 %v1418
  %v1420 = vpop.xlane.xlu0 %1419
  %v1421 = vmul.f32 %v1417, %v367
  %v1422 = vmul.f32 %v1420, %v367
  %v1423 = vadd.f32 %v1421, 1e-12
  %v1424 = vadd.f32 %v1422, 1e-12
  %v1425 = vrsqrt.pop %v1423
  %v1426 = vrsqrt.pop %v1424
  %v1427 = vmul.f32 %v1411, %v1425
  %v1428 = vmul.f32 %v1412, %v1426
  %v1429 = vlaneseq
  %v1430 = vshrl.u32 %v1429, 7
  %v1431 = vsub.s32 2, %v1430
  %v1432 = vrot.slane %v1024, %v1431
  %v1433 = vmul.f32 %v1427, %v1432
  %v1434 = vmul.f32 %v1428, %v1432
  %v1435 = vlaneseq
  %v1436 = vshrl.u32 %v1435, 7
  %v1437 = vsub.s32 3, %v1436
  %v1438 = vrot.slane %v1024, %v1437
  %v1439 = vadd.f32 %v1433, %v1438
  %v1440 = vadd.f32 %v1434, %v1438
  %v1441 = vpack.c.bf16 %v1440, %v1439
  %v1442 = vlaneseq
  %v1443 = vshrl.u32 %v1442, 7
  %v1444 = vsub.s32 4, %v1443
  %v1445 = vrot.slane %v1024, %v1444
  %v1446 = vunpack.c.h.b16 %v1019
  %v1447 = vunpack.c.h.b16 %v1020
  %v1448 = vunpack.c.h.b16 %v1021
  %v1449 = vunpack.c.h.b16 %v1022
  %v1450 = vpack.c.b16 %v1447, %v1446
  %v1451 = vpack.c.b16 %v1449, %v1448
  %v1455 = vsel %vm124, %v1441, 0
  %1457 = vmatprep.subr.bf16.mxu0 0
  %1458 = vmatpush1.bf16.msra.mxu0 %v1450
  %1459 = vmatprep.subr.bf16.mxu0 0
  %1460 = vmatpush1.bf16.msra.mxu0 %v1451
  %1461 = vmatprep.subr.bf16.mxu0 0
  %1462 = vmatpush1.bf16.msra.mxu0 0
  %1463 = vmatprep.subr.bf16.mxu0 0
  %1464 = vmatpush1.bf16.msra.mxu0 0
  %1465 = vmatprep.subr.bf16.mxu0 0
  %1466 = vmatpush1.bf16.msra.mxu0 0
  %1467 = vmatprep.subr.bf16.mxu0 0
  %1468 = vmatpush1.bf16.msra.mxu0 0
  %1469 = vmatprep.subr.bf16.mxu0 0
  %1470 = vmatpush1.bf16.msra.mxu0 0
  %1471 = vmatprep.subr.bf16.mxu0 0
  %1472 = vmatpush1.bf16.msra.mxu0 0
  %1473 = vmatprep.subr.bf16.mxu0 0
  %1474 = vmatpush1.bf16.msra.mxu0 0
  %1475 = vmatprep.subr.bf16.mxu0 0
  %1476 = vmatpush1.bf16.msra.mxu0 0
  %1477 = vmatprep.subr.bf16.mxu0 0
  %1478 = vmatpush1.bf16.msra.mxu0 0
  %1479 = vmatprep.subr.bf16.mxu0 0
  %1480 = vmatpush1.bf16.msra.mxu0 0
  %1481 = vmatprep.subr.bf16.mxu0 0
  %1482 = vmatpush1.bf16.msra.mxu0 0
  %1483 = vmatprep.subr.bf16.mxu0 0
  %1484 = vmatpush1.bf16.msra.mxu0 0
  %1485 = vmatprep.subr.bf16.mxu0 0
  %1486 = vmatpush1.bf16.msra.mxu0 0
  %1487 = vmatprep.subr.bf16.mxu0 0
  %1488 = vmatpush1.bf16.msra.mxu0 0
  %1489 = vmatprep.mubr.bf16.mxu0 0
  %1490 = vmatmul.mubr.bf16.gmra.mrb[0].mxu0 %v1455
  %v1491 = vpop.f32.mrb[0].mxu0
  %v1492 = vadd.f32 %v1445, %v1491
  %v1493 = vpop.f32.mrb[0].mxu0
  %v1494 = vpop.f32.mrb[0].mxu0
  %v1495 = vadd.f32 %v1445, %v1494
  %v1496 = vpop.f32.mrb[0].mxu0
  %1497 = vdwg.mxu0
  %v1498 = vmul.f32 %v1492, 0.5
  %v1499 = vmul.f32 %v1495, 0.5
  %v1500 = vmul.f32 %v1492, 0.044715
  %v1501 = vmul.f32 %v1495, 0.044715
  %v1502 = vmul.f32 %v1500, %v1492
  %v1503 = vmul.f32 %v1501, %v1495
  %v1504 = vmul.f32 %v1502, %v1492
  %v1505 = vmul.f32 %v1503, %v1495
  %v1506 = vadd.f32 %v1492, %v1504
  %v1507 = vadd.f32 %v1495, %v1505
  %v1508 = vmul.f32 %v1506, 0.7978846
  %v1509 = vmul.f32 %v1507, 0.7978846
  %v1510 = vtanh.pop %v1508
  %v1511 = vtanh.pop %v1509
  %v1512 = vadd.f32 %v1510, 1.0
  %v1513 = vadd.f32 %v1511, 1.0
  %v1514 = vmul.f32 %v1498, %v1512
  %v1515 = vmul.f32 %v1499, %v1513
  %v1516 = vpack.c.bf16 %v1515, %v1514
  %s1517 = scalar_lea.vmem %s6, 32
  %v1518 = vld [vmem:[%s1517] sm:$0xf]
  %v1519 = vld [vmem:[%s1517 + $0x4] sm:$0xf]
  %v1520 = vld [vmem:[%s1517 + $0x8] sm:$0xf]
  %v1521 = vld [vmem:[%s1517 + $0xc] sm:$0xf]
  %v1522 = vld [vmem:[%s1517 + $0x10] sm:$0xf]
  %v1523 = vld [vmem:[%s1517 + $0x14] sm:$0xf]
  %v1524 = vld [vmem:[%s1517 + $0x18] sm:$0xf]
  %v1525 = vld [vmem:[%s1517 + $0x1c] sm:$0xf]
  %v1526 = vlaneseq
  %v1527 = vshrl.u32 %v1526, 7
  %v1528 = vsub.s32 5, %v1527
  %v1529 = vrot.slane %v1024, %v1528
  %v1538 = vunpack.c.l.b16 %v1518
  %v1539 = vunpack.c.l.b16 %v1519
  %v1540 = vunpack.c.l.b16 %v1520
  %v1541 = vunpack.c.l.b16 %v1521
  %v1542 = vunpack.c.l.b16 %v1522
  %v1543 = vunpack.c.l.b16 %v1523
  %v1544 = vunpack.c.l.b16 %v1524
  %v1545 = vunpack.c.l.b16 %v1525
  %v1546 = vpack.c.b16 %v1539, %v1538
  %v1547 = vpack.c.b16 %v1541, %v1540
  %v1548 = vpack.c.b16 %v1543, %v1542
  %v1549 = vpack.c.b16 %v1545, %v1544
  %v1555 = vsel %vm933, %v1516, 0
  %1557 = vmatprep.subr.bf16.mxu0 0
  %1558 = vmatpush1.bf16.msra.mxu0 %v1546
  %1559 = vmatprep.subr.bf16.mxu0 0
  %1560 = vmatpush1.bf16.msra.mxu0 %v1547
  %1561 = vmatprep.subr.bf16.mxu0 0
  %1562 = vmatpush1.bf16.msra.mxu0 %v1548
  %1563 = vmatprep.subr.bf16.mxu0 0
  %1564 = vmatpush1.bf16.msra.mxu0 %v1549
  %1565 = vmatprep.subr.bf16.mxu0 0
  %1566 = vmatpush1.bf16.msra.mxu0 0
  %1567 = vmatprep.subr.bf16.mxu0 0
  %1568 = vmatpush1.bf16.msra.mxu0 0
  %1569 = vmatprep.subr.bf16.mxu0 0
  %1570 = vmatpush1.bf16.msra.mxu0 0
  %1571 = vmatprep.subr.bf16.mxu0 0
  %1572 = vmatpush1.bf16.msra.mxu0 0
  %1573 = vmatprep.subr.bf16.mxu0 0
  %1574 = vmatpush1.bf16.msra.mxu0 0
  %1575 = vmatprep.subr.bf16.mxu0 0
  %1576 = vmatpush1.bf16.msra.mxu0 0
  %1577 = vmatprep.subr.bf16.mxu0 0
  %1578 = vmatpush1.bf16.msra.mxu0 0
  %1579 = vmatprep.subr.bf16.mxu0 0
  %1580 = vmatpush1.bf16.msra.mxu0 0
  %1581 = vmatprep.subr.bf16.mxu0 0
  %1582 = vmatpush1.bf16.msra.mxu0 0
  %1583 = vmatprep.subr.bf16.mxu0 0
  %1584 = vmatpush1.bf16.msra.mxu0 0
  %1585 = vmatprep.subr.bf16.mxu0 0
  %1586 = vmatpush1.bf16.msra.mxu0 0
  %1587 = vmatprep.subr.bf16.mxu0 0
  %1588 = vmatpush1.bf16.msra.mxu0 0
  %1589 = vmatprep.mubr.bf16.mxu0 0
  %1590 = vmatmul.mubr.bf16.gmra.mrb[0].mxu0 %v1555
  %v1591 = vpop.f32.mrb[0].mxu0
  %v1592 = vadd.f32 %v1529, %v1591
  %v1593 = vpop.f32.mrb[0].mxu0
  %v1594 = vpop.f32.mrb[0].mxu0
  %v1595 = vadd.f32 %v1529, %v1594
  %v1596 = vpop.f32.mrb[0].mxu0
  %1597 = vdwg.mxu0
  %v1598 = vadd.f32 %v1592, %v1439
  %v1599 = vadd.f32 %v1595, %v1440
  %v1600 = vsel %vm124, %v1598, 0.0
  %1601 = vadd.xlane.f32.xlu0 %v1600
  %v1602 = vpop.xlane.xlu0 %1601
  %v1603 = vsel %vm124, %v1599, 0.0
  %1604 = vadd.xlane.f32.xlu0 %v1603
  %v1605 = vpop.xlane.xlu0 %1604
  %v1606 = vmul.f32 %v1602, %v367
  %v1607 = vmul.f32 %v1605, %v367
  %v1608 = vsub.f32 %v1598, %v1606
  %v1609 = vsub.f32 %v1599, %v1607
  %v1610 = vmul.f32 %v1608, %v1608
  %v1611 = vmul.f32 %v1609, %v1609
  %v1612 = vsel %vm124, %v1610, 0.0
  %1613 = vadd.xlane.f32.xlu0 %v1612
  %v1614 = vpop.xlane.xlu0 %1613
  %v1615 = vsel %vm124, %v1611, 0.0
  %1616 = vadd.xlane.f32.xlu0 %v1615
  %v1617 = vpop.xlane.xlu0 %1616
  %v1618 = vmul.f32 %v1614, %v367
  %v1619 = vmul.f32 %v1617, %v367
  %v1620 = vadd.f32 %v1618, 1e-12
  %v1621 = vadd.f32 %v1619, 1e-12
  %v1622 = vrsqrt.pop %v1620
  %v1623 = vrsqrt.pop %v1621
  %v1624 = vmul.f32 %v1608, %v1622
  %v1625 = vmul.f32 %v1609, %v1623
  %v1626 = vlaneseq
  %v1627 = vshrl.u32 %v1626, 7
  %v1628 = vsub.s32 6, %v1627
  %v1629 = vrot.slane %v1024, %v1628
  %v1630 = vmul.f32 %v1624, %v1629
  %v1631 = vmul.f32 %v1625, %v1629
  %v1632 = vlaneseq
  %v1633 = vshrl.u32 %v1632, 7
  %v1634 = vsub.s32 7, %v1633
  %v1635 = vrot.slane %v1024, %v1634
  %v1636 = vadd.f32 %v1630, %v1635
  %v1637 = vadd.f32 %v1631, %v1635
  %v1638 = vpack.c.bf16 %v1637, %v1636
  %v1639 = vld [vmem:[%s2 + $0x38] sm:$0xf]
  %v1640 = vld [vmem:[%s2 + $0x3c] sm:$0xf]
  %v1641 = vld [vmem:[%s2 + $0x40] sm:$0xf]
  %v1642 = vld [vmem:[%s2 + $0x44] sm:$0xf]
  %v1643 = vld [vmem:[%s4 + $0x16] sm:$0x1]
  %v1644 = vlaneseq
  %v1645 = vshrl.u32 %v1644, 7
  %v1646 = vsub.s32 0, %v1645
  %v1647 = vrot.slane %v1643, %v1646
  %v1652 = vunpack.c.l.b16 %v1639
  %v1653 = vunpack.c.l.b16 %v1640
  %v1654 = vunpack.c.l.b16 %v1641
  %v1655 = vunpack.c.l.b16 %v1642
  %v1656 = vpack.c.b16 %v1653, %v1652
  %v1657 = vpack.c.b16 %v1655, %v1654
  %v1661 = vsel %vm124, %v1638, 0
  %1663 = vmatprep.subr.bf16.mxu0 0
  %1664 = vmatpush1.bf16.msra.mxu0 %v1656
  %1665 = vmatprep.subr.bf16.mxu0 0
  %1666 = vmatpush1.bf16.msra.mxu0 %v1657
  %1667 = vmatprep.subr.bf16.mxu0 0
  %1668 = vmatpush1.bf16.msra.mxu0 0
  %1669 = vmatprep.subr.bf16.mxu0 0
  %1670 = vmatpush1.bf16.msra.mxu0 0
  %1671 = vmatprep.subr.bf16.mxu0 0
  %1672 = vmatpush1.bf16.msra.mxu0 0
  %1673 = vmatprep.subr.bf16.mxu0 0
  %1674 = vmatpush1.bf16.msra.mxu0 0
  %1675 = vmatprep.subr.bf16.mxu0 0
  %1676 = vmatpush1.bf16.msra.mxu0 0
  %1677 = vmatprep.subr.bf16.mxu0 0
  %1678 = vmatpush1.bf16.msra.mxu0 0
  %1679 = vmatprep.subr.bf16.mxu0 0
  %1680 = vmatpush1.bf16.msra.mxu0 0
  %1681 = vmatprep.subr.bf16.mxu0 0
  %1682 = vmatpush1.bf16.msra.mxu0 0
  %1683 = vmatprep.subr.bf16.mxu0 0
  %1684 = vmatpush1.bf16.msra.mxu0 0
  %1685 = vmatprep.subr.bf16.mxu0 0
  %1686 = vmatpush1.bf16.msra.mxu0 0
  %1687 = vmatprep.subr.bf16.mxu0 0
  %1688 = vmatpush1.bf16.msra.mxu0 0
  %1689 = vmatprep.subr.bf16.mxu0 0
  %1690 = vmatpush1.bf16.msra.mxu0 0
  %1691 = vmatprep.subr.bf16.mxu0 0
  %1692 = vmatpush1.bf16.msra.mxu0 0
  %1693 = vmatprep.subr.bf16.mxu0 0
  %1694 = vmatpush1.bf16.msra.mxu0 0
  %1695 = vmatprep.mubr.bf16.mxu0 0
  %1696 = vmatmul.mubr.bf16.gmra.mrb[0].mxu0 %v1661
  %v1697 = vpop.f32.mrb[0].mxu0
  %v1698 = vadd.f32 %v1647, %v1697
  %v1699 = vpop.f32.mrb[0].mxu0
  %v1700 = vpop.f32.mrb[0].mxu0
  %v1701 = vadd.f32 %v1647, %v1700
  %v1702 = vpop.f32.mrb[0].mxu0
  %1703 = vdwg.mxu0
  %v1704 = vtanh.pop %v1698
  %v1705 = vtanh.pop %v1701
  %v1706 = vpack.c.bf16 %v1705, %v1704
  %v1707 = vld [vmem:[%s3] sm:$0xf]
  %v1708 = vld [vmem:[%s3 + $0x4] sm:$0xf]
  %v1709 = vld [vmem:[%s3 + $0x8] sm:$0xf]
  %v1710 = vld [vmem:[%s3 + $0xc] sm:$0xf]
  %v1711 = vld [vmem:[%s4 + $0x17] sm:$0x1]
  %v1712 = vlaneseq
  %v1713 = vshrl.u32 %v1712, 7
  %v1714 = vsub.s32 0, %v1713
  %v1715 = vrot.slane %v1711, %v1714
  %v1720 = vunpack.c.l.b16 %v1707
  %v1721 = vunpack.c.l.b16 %v1708
  %v1722 = vunpack.c.l.b16 %v1709
  %v1723 = vunpack.c.l.b16 %v1710
  %v1724 = vpack.c.b16 %v1721, %v1720
  %v1725 = vpack.c.b16 %v1723, %v1722
  %v1729 = vsel %vm124, %v1706, 0
  %1731 = vmatprep.subr.bf16.mxu0 0
  %1732 = vmatpush1.bf16.msra.mxu0 %v1724
  %1733 = vmatprep.subr.bf16.mxu0 0
  %1734 = vmatpush1.bf16.msra.mxu0 %v1725
  %1735 = vmatprep.subr.bf16.mxu0 0
  %1736 = vmatpush1.bf16.msra.mxu0 0
  %1737 = vmatprep.subr.bf16.mxu0 0
  %1738 = vmatpush1.bf16.msra.mxu0 0
  %1739 = vmatprep.subr.bf16.mxu0 0
  %1740 = vmatpush1.bf16.msra.mxu0 0
  %1741 = vmatprep.subr.bf16.mxu0 0
  %1742 = vmatpush1.bf16.msra.mxu0 0
  %1743 = vmatprep.subr.bf16.mxu0 0
  %1744 = vmatpush1.bf16.msra.mxu0 0
  %1745 = vmatprep.subr.bf16.mxu0 0
  %1746 = vmatpush1.bf16.msra.mxu0 0
  %1747 = vmatprep.subr.bf16.mxu0 0
  %1748 = vmatpush1.bf16.msra.mxu0 0
  %1749 = vmatprep.subr.bf16.mxu0 0
  %1750 = vmatpush1.bf16.msra.mxu0 0
  %1751 = vmatprep.subr.bf16.mxu0 0
  %1752 = vmatpush1.bf16.msra.mxu0 0
  %1753 = vmatprep.subr.bf16.mxu0 0
  %1754 = vmatpush1.bf16.msra.mxu0 0
  %1755 = vmatprep.subr.bf16.mxu0 0
  %1756 = vmatpush1.bf16.msra.mxu0 0
  %1757 = vmatprep.subr.bf16.mxu0 0
  %1758 = vmatpush1.bf16.msra.mxu0 0
  %1759 = vmatprep.subr.bf16.mxu0 0
  %1760 = vmatpush1.bf16.msra.mxu0 0
  %1761 = vmatprep.subr.bf16.mxu0 0
  %1762 = vmatpush1.bf16.msra.mxu0 0
  %1763 = vmatprep.mubr.bf16.mxu0 0
  %1764 = vmatmul.mubr.bf16.gmra.mrb[0].mxu0 %v1729
  %v1765 = vpop.f32.mrb[0].mxu0
  %v1766 = vadd.f32 %v1715, %v1765
  %v1767 = vpop.f32.mrb[0].mxu0
  %v1768 = vpop.f32.mrb[0].mxu0
  %v1769 = vadd.f32 %v1715, %v1768
  %v1770 = vpop.f32.mrb[0].mxu0
  %1771 = vdwg.mxu0
  %1772 = vst [vmem:[%s8] sm:$0xff] %v1766
  %1773 = vst [vmem:[%s8 + $0x8] sm:$0xff] %v1769
  // Predicated region
  $region34: #{rings_net_forward.1} parent=0 // pred_check
    _
  $region35: #{rings_net_forward.1} parent=0 // pred_check_branch
    %1775 = sbr.rel (0) target = $region37
  $region36: #{rings_net_forward.1} parent=0 // pred_region
    _
  $region37: #{rings_net_forward.1} parent=0 // pred_fallthru
    _
  // Predicated region
  $region38: #{rings_net_forward.1} parent=0 // pred_check
    _
  $region39: #{rings_net_forward.1} parent=0 // pred_check_branch
    %1777 = sbr.rel (0) target = $region41
  $region40: #{rings_net_forward.1} parent=0 // pred_region
    _
  $region41: #{rings_net_forward.1} parent=0 // pred_fallthru
    _

</llo_original>
